<compile_context>
chip_gen: v7x
topology: tpu7x:2x2x1
jax: 0.10.0
libtpu: 0.0.40
codegen_flags: <defaults>
</compile_context>

<pallas_src>
import functools
import math

import jax
import jax.numpy as jnp
from jax import lax
from jax.experimental import pallas as pl
from jax.experimental.pallas import tpu as pltpu


# ---------------------------------------------------------------------------
# helpers
# ---------------------------------------------------------------------------

def _pick_tile(dim, candidates=(512, 256, 128)):
    """Largest candidate tile that evenly divides `dim`, else the full dim.

    Candidates are multiples of 128 so tiled blocks are (8,128)-aligned.
    # TODO(synk): pad to a tile multiple for large dims that nothing divides
    # (currently falls back to the full dimension, which is VMEM-brittle).
    """
    for c in candidates:
        if c <= dim and dim % c == 0:
            return c
    return dim


def _vmem_limit_bytes():
    """Generation-aware scoped-VMEM limit (v5e/v6e: 128 MiB phys, v7x: 64 MiB)."""
    try:
        cap = pltpu.get_tpu_info().vmem_capacity_bytes
        return int(min(cap * 3 // 4, 100 * 1024 * 1024))
    except Exception:
        return 40 * 1024 * 1024  # safe on every generation, >> v5e 16 MiB default


_VMEM_LIMIT = _vmem_limit_bytes()

# contract x's last dim with w's last dim (w stays in torch (out, in) layout),
# i.e. x @ w.T without materializing w.T.
_MM_DIMS = (((1,), (1,)), ((), ()))

_MATMUL_PARAMS = pltpu.CompilerParams(
    dimension_semantics=("parallel", "parallel", "arbitrary"),
    vmem_limit_bytes=_VMEM_LIMIT)


# ---------------------------------------------------------------------------
# Pallas kernels
# ---------------------------------------------------------------------------

def _qkv_proj_kernel(xq_ref, xk_ref, xv_ref, wq_ref, wk_ref, wv_ref,
                     oq_ref, ok_ref, ov_ref, accq, acck, accv):
    """Fused Q/K/V projections (bf16 MXU inputs, f32 scratch accumulators)."""
    @pl.when(pl.program_id(2) == 0)
    def _init():
        accq[...] = jnp.zeros_like(accq)
        acck[...] = jnp.zeros_like(acck)
        accv[...] = jnp.zeros_like(accv)

    accq[...] += lax.dot_general(xq_ref[...].astype(jnp.bfloat16), wq_ref[...],
                                 _MM_DIMS, preferred_element_type=jnp.float32)
    acck[...] += lax.dot_general(xk_ref[...].astype(jnp.bfloat16), wk_ref[...],
                                 _MM_DIMS, preferred_element_type=jnp.float32)
    accv[...] += lax.dot_general(xv_ref[...].astype(jnp.bfloat16), wv_ref[...],
                                 _MM_DIMS, preferred_element_type=jnp.float32)

    @pl.when(pl.program_id(2) == pl.num_programs(2) - 1)
    def _store():
        oq_ref[...] = accq[...].astype(oq_ref.dtype)
        ok_ref[...] = acck[...].astype(ok_ref.dtype)
        ov_ref[...] = accv[...].astype(ov_ref.dtype)


def _qkv_proj_shared_kernel(x_ref, wq_ref, wk_ref, wv_ref,
                            oq_ref, ok_ref, ov_ref, accq, acck, accv):
    """Self-attention variant: one activation stream feeds all three matmuls."""
    @pl.when(pl.program_id(2) == 0)
    def _init():
        accq[...] = jnp.zeros_like(accq)
        acck[...] = jnp.zeros_like(acck)
        accv[...] = jnp.zeros_like(accv)

    xb = x_ref[...].astype(jnp.bfloat16)
    accq[...] += lax.dot_general(xb, wq_ref[...], _MM_DIMS,
                                 preferred_element_type=jnp.float32)
    acck[...] += lax.dot_general(xb, wk_ref[...], _MM_DIMS,
                                 preferred_element_type=jnp.float32)
    accv[...] += lax.dot_general(xb, wv_ref[...], _MM_DIMS,
                                 preferred_element_type=jnp.float32)

    @pl.when(pl.program_id(2) == pl.num_programs(2) - 1)
    def _store():
        oq_ref[...] = accq[...].astype(oq_ref.dtype)
        ok_ref[...] = acck[...].astype(ok_ref.dtype)
        ov_ref[...] = accv[...].astype(ov_ref.dtype)


def _linear_kernel(x_ref, w_ref, o_ref, acc_ref):
    """x @ W^T with W in torch (out, in) layout (cross-attention fallback)."""
    @pl.when(pl.program_id(2) == 0)
    def _init():
        acc_ref[...] = jnp.zeros_like(acc_ref)

    acc_ref[...] += lax.dot_general(x_ref[...].astype(jnp.bfloat16), w_ref[...],
                                    _MM_DIMS, preferred_element_type=jnp.float32)

    @pl.when(pl.program_id(2) == pl.num_programs(2) - 1)
    def _store():
        o_ref[...] = acc_ref[...].astype(o_ref.dtype)


def _flash_attn_fc_kernel(q_ref, k_ref, v_ref, wfc_ref, bfc_ref, o_ref,
                          m_sc, l_sc, acc_sc, *, inv_scale):
    """Online-softmax attention + permute + fc(+bias) for one (batch, q-tile).

    q_ref: (1, H, tq, d) bf16, k_ref/v_ref: (1, H, tk, d) bf16,
    wfc_ref: (H, d, F) bf16 (Wfc pre-reshaped so wfc[h,dd,f] = Wfc[f, h*d+dd]),
    bfc_ref: (1, F) f32, o_ref: (1, tq, F) f32.
    Scratch: m/l (H, tq, 1) f32, acc (H, tq, d) f32, carried over the KV axis.
    """
    kv = pl.program_id(2)

    @pl.when(kv == 0)
    def _init():
        m_sc[...] = jnp.full_like(m_sc, -jnp.inf)
        l_sc[...] = jnp.zeros_like(l_sc)
        acc_sc[...] = jnp.zeros_like(acc_sc)

    # 1/sqrt(d) folded into q (H*tq*d muls instead of H*tq*tk).
    q = q_ref[0].astype(jnp.bfloat16) * inv_scale          # (H, tq, d)
    k = k_ref[0].astype(jnp.bfloat16)                       # (H, tk, d)
    v = v_ref[0].astype(jnp.bfloat16)

    # scores (H, tq, tk): batched bf16 matmul, f32 accumulation on the MXU.
    s = jnp.einsum("hqd,hkd->hqk", q, k, preferred_element_type=jnp.float32)

    # online softmax update.
    # TODO(synk): on v6e/v7x the exp could run at bf16 for 2x EUP throughput.
    m_prev = m_sc[...]
    m_new = jnp.maximum(m_prev, jnp.max(s, axis=-1, keepdims=True))
    alpha = jnp.exp(m_prev - m_new)
    p = jnp.exp(s - m_new)                                   # f32 probs
    l_sc[...] = alpha * l_sc[...] + jnp.sum(p, axis=-1, keepdims=True)
    acc_sc[...] = alpha * acc_sc[...] + jnp.einsum(
        "hqk,hkd->hqd", p.astype(jnp.bfloat16), v,
        preferred_element_type=jnp.float32)
    m_sc[...] = m_new

    @pl.when(kv == pl.num_programs(2) - 1)
    def _finalize():
        # normalize AFTER the PV matmul: H*tq*d muls instead of H*tq*tk.
        x = acc_sc[...] * pl.reciprocal(l_sc[...], approx=True)   # (H, tq, d)
        # permute(0,2,1,3)+view+fc as one batched matmul summed over heads:
        # out[q,f] = sum_{h,dd} x[h,q,dd] * Wfc[f, h*d+dd]
        y = jnp.einsum("hqd,hdf->hqf", x.astype(jnp.bfloat16), wfc_ref[...],
                       preferred_element_type=jnp.float32)        # (H, tq, F)
        o_ref[0] = jnp.sum(y, axis=0) + bfc_ref[...]              # (tq, F)


# ---------------------------------------------------------------------------
# Wrappers around pallas_call
# ---------------------------------------------------------------------------

def qkv_project(xq, xk, xv, wq, wk, wv):
    """Fused Q/K/V projection.  x*: (M, F_in) f32, w*: (F_out, F_in) f32 torch
    layout.  Returns three (M, F_out) bf16 arrays."""
    m, kd = xq.shape
    n = wq.shape[0]
    tm, tn, tk = _pick_tile(m), _pick_tile(n), _pick_tile(kd)

    x_spec = pl.BlockSpec((tm, tk), lambda i, j, kk: (i, kk))
    w_spec = pl.BlockSpec((tn, tk), lambda i, j, kk: (j, kk))
    o_spec = pl.BlockSpec((tm, tn), lambda i, j, kk: (i, j))
    out_sd = jax.ShapeDtypeStruct((m, n), jnp.bfloat16)

    return pl.pallas_call(
        _qkv_proj_kernel,
        out_shape=(out_sd, out_sd, out_sd),
        grid=(m // tm, n // tn, kd // tk),
        in_specs=[x_spec, x_spec, x_spec, w_spec, w_spec, w_spec],
        out_specs=(o_spec, o_spec, o_spec),
        scratch_shapes=[pltpu.VMEM((tm, tn), jnp.float32) for _ in range(3)],
        compiler_params=_MATMUL_PARAMS,
    )(xq, xk, xv,
      wq.astype(jnp.bfloat16), wk.astype(jnp.bfloat16), wv.astype(jnp.bfloat16))


def qkv_project_shared(x, wq, wk, wv):
    """Self-attention projection: activation streamed from HBM once."""
    m, kd = x.shape
    n = wq.shape[0]
    tm, tn, tk = _pick_tile(m), _pick_tile(n), _pick_tile(kd)

    x_spec = pl.BlockSpec((tm, tk), lambda i, j, kk: (i, kk))
    w_spec = pl.BlockSpec((tn, tk), lambda i, j, kk: (j, kk))
    o_spec = pl.BlockSpec((tm, tn), lambda i, j, kk: (i, j))
    out_sd = jax.ShapeDtypeStruct((m, n), jnp.bfloat16)

    return pl.pallas_call(
        _qkv_proj_shared_kernel,
        out_shape=(out_sd, out_sd, out_sd),
        grid=(m // tm, n // tn, kd // tk),
        in_specs=[x_spec, w_spec, w_spec, w_spec],
        out_specs=(o_spec, o_spec, o_spec),
        scratch_shapes=[pltpu.VMEM((tm, tn), jnp.float32) for _ in range(3)],
        compiler_params=_MATMUL_PARAMS,
    )(x, wq.astype(jnp.bfloat16), wk.astype(jnp.bfloat16),
      wv.astype(jnp.bfloat16))


def linear_nobias(x2d, w):
    """x2d: (M, F_in) f32, w: (F_out, F_in) f32 torch layout -> (M, F_out) bf16."""
    m, kd = x2d.shape
    n = w.shape[0]
    tm, tn, tk = _pick_tile(m), _pick_tile(n), _pick_tile(kd)

    return pl.pallas_call(
        _linear_kernel,
        out_shape=jax.ShapeDtypeStruct((m, n), jnp.bfloat16),
        grid=(m // tm, n // tn, kd // tk),
        in_specs=[pl.BlockSpec((tm, tk), lambda i, j, kk: (i, kk)),
                  pl.BlockSpec((tn, tk), lambda i, j, kk: (j, kk))],
        out_specs=pl.BlockSpec((tm, tn), lambda i, j, kk: (i, j)),
        scratch_shapes=[pltpu.VMEM((tm, tn), jnp.float32)],
        compiler_params=_MATMUL_PARAMS,
    )(x2d, w.astype(jnp.bfloat16))


def attention_fc(q, k, v, wfc_r, bfc, *, inv_scale):
    """q: (B, H, Sq, d), k/v: (B, H, Sk, d) (bf16), wfc_r: (H, d, F) bf16,
    bfc: (1, F) f32  ->  (B, Sq, F) f32.

    Grid = (B, Sq-tiles, KV-tiles) with the KV axis last/"arbitrary"; online
    softmax scratch is carried across it.  Wfc/bfc use constant block indices
    so they stay resident in VMEM.
    # TODO(synk): for very large F on v7x, add an output-F grid axis so only an
    # (H, d, tn) slab of Wfc is resident per step.
    """
    b, h, sq, d = q.shape
    sk = k.shape[2]
    f = h * d
    tq = _pick_tile(sq, (256, 128))
    tk = _pick_tile(sk, (512, 256, 128))

    kernel = functools.partial(_flash_attn_fc_kernel, inv_scale=float(inv_scale))
    return pl.pallas_call(
        kernel,
        out_shape=jax.ShapeDtypeStruct((b, sq, f), jnp.float32),
        grid=(b, sq // tq, sk // tk),
        in_specs=[
            pl.BlockSpec((1, h, tq, d), lambda bi, qi, ki: (bi, 0, qi, 0)),
            pl.BlockSpec((1, h, tk, d), lambda bi, qi, ki: (bi, 0, ki, 0)),
            pl.BlockSpec((1, h, tk, d), lambda bi, qi, ki: (bi, 0, ki, 0)),
            pl.BlockSpec((h, d, f), lambda bi, qi, ki: (0, 0, 0)),
            pl.BlockSpec((1, f), lambda bi, qi, ki: (0, 0)),
        ],
        out_specs=pl.BlockSpec((1, tq, f), lambda bi, qi, ki: (bi, qi, 0)),
        scratch_shapes=[
            pltpu.VMEM((h, tq, 1), jnp.float32),   # m
            pltpu.VMEM((h, tq, 1), jnp.float32),   # l
            pltpu.VMEM((h, tq, d), jnp.float32),   # acc
        ],
        compiler_params=pltpu.CompilerParams(
            dimension_semantics=("parallel", "parallel", "arbitrary"),
            vmem_limit_bytes=_VMEM_LIMIT),
    )(q, k, v, wfc_r, bfc)


# ---------------------------------------------------------------------------
# Module-equivalent forward
# ---------------------------------------------------------------------------

def init_attention_params(key, in_feature):
    """Deterministic init matching nn.Linear shapes (torch (out, in) layout)."""
    k1, k2, k3, k4, k5 = jax.random.split(key, 5)
    bound = 1.0 / math.sqrt(in_feature)
    u = lambda k, shape: jax.random.uniform(
        k, shape, minval=-bound, maxval=bound, dtype=jnp.float32)
    return {
        "Wq": u(k1, (in_feature, in_feature)),
        "Wk": u(k2, (in_feature, in_feature)),
        "Wv": u(k3, (in_feature, in_feature)),
        "Wfc": u(k4, (in_feature, in_feature)),
        "bfc": u(k5, (in_feature,)),
    }


def attention_forward(params, query, key, value, num_head, attn_mask=None):
    # TODO(synk): attn_mask path (masked_fill before softmax) not wired into
    # the Pallas kernel; this forward supports attn_mask=None only.
    assert attn_mask is None
    in_feature = query.shape[-1]
    size_per_head = in_feature // num_head
    inv_scale = 1.0 / math.sqrt(float(size_per_head))

    batch_size = key.shape[0]
    sq, sk, sv = query.shape[1], key.shape[1], value.shape[1]

    if (query is key) and (key is value):
        # self-attention: stream the shared activation from HBM once.
        x2 = query.reshape(batch_size * sq, in_feature)
        q, k, v = qkv_project_shared(x2, params["Wq"], params["Wk"], params["Wv"])
    elif sq == sk == sv:
        q2 = query.reshape(batch_size * sq, in_feature)
        k2 = key.reshape(batch_size * sk, in_feature)
        v2 = value.reshape(batch_size * sv, in_feature)
        q, k, v = qkv_project(q2, k2, v2, params["Wq"], params["Wk"], params["Wv"])
    else:
        q = linear_nobias(query.reshape(batch_size * sq, in_feature), params["Wq"])
        k = linear_nobias(key.reshape(batch_size * sk, in_feature), params["Wk"])
        v = linear_nobias(value.reshape(batch_size * sv, in_feature), params["Wv"])

    # torch .view(batch, num_head, -1, size_per_head): a plain row-major
    # reshape of a contiguous buffer (free — no data movement).
    q = q.reshape(batch_size, num_head, -1, size_per_head)
    k = k.reshape(batch_size, num_head, -1, size_per_head)
    v = v.reshape(batch_size, num_head, -1, size_per_head)

    # fc weight pre-reshaped once per call: wfc_r[h, dd, f] = Wfc[f, h*d + dd]
    wfc_r = jnp.transpose(
        params["Wfc"].reshape(in_feature, num_head, size_per_head),
        (1, 2, 0)).astype(jnp.bfloat16)
    bfc = params["bfc"].reshape(1, in_feature)

    # flash attention + permute(0,2,1,3) + view + fc(+bias), fused.
    x = attention_fc(q, k, v, wfc_r, bfc, inv_scale=inv_scale)

    # torch .squeeze(1): only squeezes if that dim has size 1
    if x.shape[1] == 1:
        x = jnp.squeeze(x, axis=1)
    return x


# ---------------------------------------------------------------------------
# Pure-JAX reference (mirrors the PyTorch forward) for correctness check
# ---------------------------------------------------------------------------

def attention_reference(params, query, key, value, num_head):
    in_feature = query.shape[-1]
    d = in_feature // num_head
    scale = math.sqrt(float(d))
    b = key.shape[0]

    q = query @ params["Wq"].T
    k = key @ params["Wk"].T
    v = value @ params["Wv"].T
    q = q.reshape(b, num_head, -1, d)
    k = k.reshape(b, num_head, -1, d)
    v = v.reshape(b, num_head, -1, d)
    energy = jnp.einsum("bhqd,bhkd->bhqk", q, k) / scale
    attn = jax.nn.softmax(energy, axis=-1)
    x = jnp.einsum("bhqk,bhkd->bhqd", attn, v)
    x = jnp.transpose(x, (0, 2, 1, 3)).reshape(b, -1, in_feature)
    x = x @ params["Wfc"].T + params["bfc"]
    if x.shape[1] == 1:
        x = jnp.squeeze(x, axis=1)
    return x


# ---------------------------------------------------------------------------

if __name__ == "__main__":
    B, S, F, H = 2, 8, 32, 4   # in_feature=32, num_head=4 -> size_per_head=8

    root = jax.random.PRNGKey(0)
    kp, kq, kk, kv = jax.random.split(root, 4)
    params = init_attention_params(kp, F)

    query = jax.random.normal(kq, (B, S, F), dtype=jnp.float32)
    key = jax.random.normal(kk, (B, S, F), dtype=jnp.float32)
    value = jax.random.normal(kv, (B, S, F), dtype=jnp.float32)

    # cross-input path (q/k/v distinct), jitted.
    fwd = jax.jit(functools.partial(attention_forward, num_head=H))
    out = jax.block_until_ready(fwd(params, query, key, value))
    ref = attention_reference(params, query, key, value, num_head=H)
    assert out.shape == ref.shape, (out.shape, ref.shape)
    # bf16 MXU inputs + approx reciprocal -> looser tolerance than pure f32.
    assert jnp.allclose(out, ref, atol=3e-2, rtol=3e-2), "mismatch vs reference"

    # self-attention path (shared-activation projection kernel); called eagerly
    # so the `query is key is value` identity dispatch actually triggers.
    out_sa = jax.block_until_ready(
        attention_forward(params, query, query, query, num_head=H))
    ref_sa = attention_reference(params, query, query, query, num_head=H)
    assert out_sa.shape == ref_sa.shape
    assert jnp.allclose(out_sa, ref_sa, atol=3e-2, rtol=3e-2), \
        "mismatch vs reference (self-attention path)"

    print("KERNEL_OK")
</pallas_src>

<mosaic_0001>
module attributes {stable_mosaic.version = 11 : i64} {
  func.func @_qkv_proj_kernel(%arg0: i32, %arg1: i32, %arg2: i32, %arg3: memref<16x32xf32, #tpu.memory_space<vmem>>, %arg4: memref<16x32xf32, #tpu.memory_space<vmem>>, %arg5: memref<16x32xf32, #tpu.memory_space<vmem>>, %arg6: memref<32x32xbf16, #tpu.memory_space<vmem>>, %arg7: memref<32x32xbf16, #tpu.memory_space<vmem>>, %arg8: memref<32x32xbf16, #tpu.memory_space<vmem>>, %arg9: memref<16x32xbf16, #tpu.memory_space<vmem>>, %arg10: memref<16x32xbf16, #tpu.memory_space<vmem>>, %arg11: memref<16x32xbf16, #tpu.memory_space<vmem>>, %arg12: memref<16x32xf32, #tpu.memory_space<vmem>>, %arg13: memref<16x32xf32, #tpu.memory_space<vmem>>, %arg14: memref<16x32xf32, #tpu.memory_space<vmem>>) attributes {dimension_semantics = [#tpu.dimension_semantics<parallel>, #tpu.dimension_semantics<parallel>, #tpu.dimension_semantics<arbitrary>], iteration_bounds = array<i64: 1, 1, 1>, scalar_prefetch = 0 : i64, scratch_operands = 3 : i64, tpu.core_type = #tpu.core_type<tc>, window_params = [{transform_indices = @transform_0, window_bounds = array<i64: 16, 32>}, {transform_indices = @transform_1, window_bounds = array<i64: 16, 32>}, {transform_indices = @transform_2, window_bounds = array<i64: 16, 32>}, {transform_indices = @transform_3, window_bounds = array<i64: 32, 32>}, {transform_indices = @transform_4, window_bounds = array<i64: 32, 32>}, {transform_indices = @transform_5, window_bounds = array<i64: 32, 32>}, {transform_indices = @transform_6, window_bounds = array<i64: 16, 32>}, {transform_indices = @transform_7, window_bounds = array<i64: 16, 32>}, {transform_indices = @transform_8, window_bounds = array<i64: 16, 32>}]} {
    %c0_i32 = arith.constant 0 : i32
    %0 = arith.cmpi eq, %arg2, %c0_i32 : i32
    %1 = arith.extui %0 : i1 to i32
    %c0_i32_0 = arith.constant 0 : i32
    %2 = arith.cmpi ne, %1, %c0_i32_0 : i32
    scf.if %2 {
      %cst_28 = arith.constant 0.000000e+00 : f32
      %27 = vector.broadcast %cst_28 : f32 to vector<16x32xf32>
      %c0_29 = arith.constant 0 : index
      %c0_30 = arith.constant 0 : index
      %28 = vector.load %arg12[%c0_29, %c0_30] : memref<16x32xf32, #tpu.memory_space<vmem>>, vector<16x32xf32>
      tpu.vector_store %arg12[%c0_29, %c0_30], %27 {strides = array<i32>} : memref<16x32xf32, #tpu.memory_space<vmem>>, vector<16x32xf32>,
      %cst_31 = arith.constant 0.000000e+00 : f32
      %29 = vector.broadcast %cst_31 : f32 to vector<16x32xf32>
      %c0_32 = arith.constant 0 : index
      %c0_33 = arith.constant 0 : index
      %30 = vector.load %arg13[%c0_32, %c0_33] : memref<16x32xf32, #tpu.memory_space<vmem>>, vector<16x32xf32>
      tpu.vector_store %arg13[%c0_32, %c0_33], %29 {strides = array<i32>} : memref<16x32xf32, #tpu.memory_space<vmem>>, vector<16x32xf32>,
      %cst_34 = arith.constant 0.000000e+00 : f32
      %31 = vector.broadcast %cst_34 : f32 to vector<16x32xf32>
      %c0_35 = arith.constant 0 : index
      %c0_36 = arith.constant 0 : index
      %32 = vector.load %arg14[%c0_35, %c0_36] : memref<16x32xf32, #tpu.memory_space<vmem>>, vector<16x32xf32>
      tpu.vector_store %arg14[%c0_35, %c0_36], %31 {strides = array<i32>} : memref<16x32xf32, #tpu.memory_space<vmem>>, vector<16x32xf32>,
    } else {
    }
    %c0 = arith.constant 0 : index
    %c0_1 = arith.constant 0 : index
    %3 = vector.load %arg12[%c0, %c0_1] : memref<16x32xf32, #tpu.memory_space<vmem>>, vector<16x32xf32>
    %c0_2 = arith.constant 0 : index
    %c0_3 = arith.constant 0 : index
    %4 = vector.load %arg3[%c0_2, %c0_3] : memref<16x32xf32, #tpu.memory_space<vmem>>, vector<16x32xf32>
    %5 = arith.truncf %4 : vector<16x32xf32> to vector<16x32xbf16>
    %c0_4 = arith.constant 0 : index
    %c0_5 = arith.constant 0 : index
    %6 = vector.load %arg6[%c0_4, %c0_5] : memref<32x32xbf16, #tpu.memory_space<vmem>>, vector<32x32xbf16>
    %cst = arith.constant dense<0.000000e+00> : vector<16x32xf32>
    %7 = tpu.matmul %5, %6, %cst {dimension_numbers = #tpu.dot_dimension_numbers<[1], [1], [0], [0], [0, 0, 1, 0], [], []>} : vector<16x32xbf16>, vector<32x32xbf16>, vector<16x32xf32> -> vector<16x32xf32>
    %8 = arith.addf %3, %7 : vector<16x32xf32>
    %c0_6 = arith.constant 0 : index
    %c0_7 = arith.constant 0 : index
    %9 = vector.load %arg12[%c0_6, %c0_7] : memref<16x32xf32, #tpu.memory_space<vmem>>, vector<16x32xf32>
    tpu.vector_store %arg12[%c0_6, %c0_7], %8 {strides = array<i32>} : memref<16x32xf32, #tpu.memory_space<vmem>>, vector<16x32xf32>,
    %c0_8 = arith.constant 0 : index
    %c0_9 = arith.constant 0 : index
    %10 = vector.load %arg13[%c0_8, %c0_9] : memref<16x32xf32, #tpu.memory_space<vmem>>, vector<16x32xf32>
    %c0_10 = arith.constant 0 : index
    %c0_11 = arith.constant 0 : index
    %11 = vector.load %arg4[%c0_10, %c0_11] : memref<16x32xf32, #tpu.memory_space<vmem>>, vector<16x32xf32>
    %12 = arith.truncf %11 : vector<16x32xf32> to vector<16x32xbf16>
    %c0_12 = arith.constant 0 : index
    %c0_13 = arith.constant 0 : index
    %13 = vector.load %arg7[%c0_12, %c0_13] : memref<32x32xbf16, #tpu.memory_space<vmem>>, vector<32x32xbf16>
    %cst_14 = arith.constant dense<0.000000e+00> : vector<16x32xf32>
    %14 = tpu.matmul %12, %13, %cst_14 {dimension_numbers = #tpu.dot_dimension_numbers<[1], [1], [0], [0], [0, 0, 1, 0], [], []>} : vector<16x32xbf16>, vector<32x32xbf16>, vector<16x32xf32> -> vector<16x32xf32>
    %15 = arith.addf %10, %14 : vector<16x32xf32>
    %c0_15 = arith.constant 0 : index
    %c0_16 = arith.constant 0 : index
    %16 = vector.load %arg13[%c0_15, %c0_16] : memref<16x32xf32, #tpu.memory_space<vmem>>, vector<16x32xf32>
    tpu.vector_store %arg13[%c0_15, %c0_16], %15 {strides = array<i32>} : memref<16x32xf32, #tpu.memory_space<vmem>>, vector<16x32xf32>,
    %c0_17 = arith.constant 0 : index
    %c0_18 = arith.constant 0 : index
    %17 = vector.load %arg14[%c0_17, %c0_18] : memref<16x32xf32, #tpu.memory_space<vmem>>, vector<16x32xf32>
    %c0_19 = arith.constant 0 : index
    %c0_20 = arith.constant 0 : index
    %18 = vector.load %arg5[%c0_19, %c0_20] : memref<16x32xf32, #tpu.memory_space<vmem>>, vector<16x32xf32>
    %19 = arith.truncf %18 : vector<16x32xf32> to vector<16x32xbf16>
    %c0_21 = arith.constant 0 : index
    %c0_22 = arith.constant 0 : index
    %20 = vector.load %arg8[%c0_21, %c0_22] : memref<32x32xbf16, #tpu.memory_space<vmem>>, vector<32x32xbf16>
    %cst_23 = arith.constant dense<0.000000e+00> : vector<16x32xf32>
    %21 = tpu.matmul %19, %20, %cst_23 {dimension_numbers = #tpu.dot_dimension_numbers<[1], [1], [0], [0], [0, 0, 1, 0], [], []>} : vector<16x32xbf16>, vector<32x32xbf16>, vector<16x32xf32> -> vector<16x32xf32>
    %22 = arith.addf %17, %21 : vector<16x32xf32>
    %c0_24 = arith.constant 0 : index
    %c0_25 = arith.constant 0 : index
    %23 = vector.load %arg14[%c0_24, %c0_25] : memref<16x32xf32, #tpu.memory_space<vmem>>, vector<16x32xf32>
    tpu.vector_store %arg14[%c0_24, %c0_25], %22 {strides = array<i32>} : memref<16x32xf32, #tpu.memory_space<vmem>>, vector<16x32xf32>,
    %c0_i32_26 = arith.constant 0 : i32
    %24 = arith.cmpi eq, %arg2, %c0_i32_26 : i32
    %25 = arith.extui %24 : i1 to i32
    %c0_i32_27 = arith.constant 0 : i32
    %26 = arith.cmpi ne, %25, %c0_i32_27 : i32
    scf.if %26 {
      %c0_28 = arith.constant 0 : index
      %c0_29 = arith.constant 0 : index
      %27 = vector.load %arg12[%c0_28, %c0_29] : memref<16x32xf32, #tpu.memory_space<vmem>>, vector<16x32xf32>
      %28 = arith.truncf %27 : vector<16x32xf32> to vector<16x32xbf16>
      %c0_30 = arith.constant 0 : index
      %c0_31 = arith.constant 0 : index
      %29 = vector.load %arg9[%c0_30, %c0_31] : memref<16x32xbf16, #tpu.memory_space<vmem>>, vector<16x32xbf16>
      tpu.vector_store %arg9[%c0_30, %c0_31], %28 {strides = array<i32>} : memref<16x32xbf16, #tpu.memory_space<vmem>>, vector<16x32xbf16>,
      %c0_32 = arith.constant 0 : index
      %c0_33 = arith.constant 0 : index
      %30 = vector.load %arg13[%c0_32, %c0_33] : memref<16x32xf32, #tpu.memory_space<vmem>>, vector<16x32xf32>
      %31 = arith.truncf %30 : vector<16x32xf32> to vector<16x32xbf16>
      %c0_34 = arith.constant 0 : index
      %c0_35 = arith.constant 0 : index
      %32 = vector.load %arg10[%c0_34, %c0_35] : memref<16x32xbf16, #tpu.memory_space<vmem>>, vector<16x32xbf16>
      tpu.vector_store %arg10[%c0_34, %c0_35], %31 {strides = array<i32>} : memref<16x32xbf16, #tpu.memory_space<vmem>>, vector<16x32xbf16>,
      %c0_36 = arith.constant 0 : index
      %c0_37 = arith.constant 0 : index
      %33 = vector.load %arg14[%c0_36, %c0_37] : memref<16x32xf32, #tpu.memory_space<vmem>>, vector<16x32xf32>
      %34 = arith.truncf %33 : vector<16x32xf32> to vector<16x32xbf16>
      %c0_38 = arith.constant 0 : index
      %c0_39 = arith.constant 0 : index
      %35 = vector.load %arg11[%c0_38, %c0_39] : memref<16x32xbf16, #tpu.memory_space<vmem>>, vector<16x32xbf16>
      tpu.vector_store %arg11[%c0_38, %c0_39], %34 {strides = array<i32>} : memref<16x32xbf16, #tpu.memory_space<vmem>>, vector<16x32xbf16>,
    } else {
    }
    return
  }
  func.func @transform_0(%arg0: i32, %arg1: i32, %arg2: i32) -> (i32, i32) {
    %c0_i32 = arith.constant 0 : i32
    return %arg0, %arg2 : i32, i32
  }
  func.func @transform_1(%arg0: i32, %arg1: i32, %arg2: i32) -> (i32, i32) {
    %c0_i32 = arith.constant 0 : i32
    return %arg0, %arg2 : i32, i32
  }
  func.func @transform_2(%arg0: i32, %arg1: i32, %arg2: i32) -> (i32, i32) {
    %c0_i32 = arith.constant 0 : i32
    return %arg0, %arg2 : i32, i32
  }
  func.func @transform_3(%arg0: i32, %arg1: i32, %arg2: i32) -> (i32, i32) {
    %c0_i32 = arith.constant 0 : i32
    return %arg1, %arg2 : i32, i32
  }
  func.func @transform_4(%arg0: i32, %arg1: i32, %arg2: i32) -> (i32, i32) {
    %c0_i32 = arith.constant 0 : i32
    return %arg1, %arg2 : i32, i32
  }
  func.func @transform_5(%arg0: i32, %arg1: i32, %arg2: i32) -> (i32, i32) {
    %c0_i32 = arith.constant 0 : i32
    return %arg1, %arg2 : i32, i32
  }
  func.func @transform_6(%arg0: i32, %arg1: i32, %arg2: i32) -> (i32, i32) {
    %c0_i32 = arith.constant 0 : i32
    return %arg0, %arg1 : i32, i32
  }
  func.func @transform_7(%arg0: i32, %arg1: i32, %arg2: i32) -> (i32, i32) {
    %c0_i32 = arith.constant 0 : i32
    return %arg0, %arg1 : i32, i32
  }
  func.func @transform_8(%arg0: i32, %arg1: i32, %arg2: i32) -> (i32, i32) {
    %c0_i32 = arith.constant 0 : i32
    return %arg0, %arg1 : i32, i32
  }
}

module attributes {stable_mosaic.version = 11 : i64} {
  func.func @_flash_attn_fc_kernel(%arg0: i32, %arg1: i32, %arg2: i32, %arg3: memref<1x4x8x8xbf16, #tpu.memory_space<vmem>>, %arg4: memref<1x4x8x8xbf16, #tpu.memory_space<vmem>>, %arg5: memref<1x4x8x8xbf16, #tpu.memory_space<vmem>>, %arg6: memref<4x8x32xbf16, #tpu.memory_space<vmem>>, %arg7: memref<1x32xf32, #tpu.memory_space<vmem>>, %arg8: memref<1x8x32xf32, #tpu.memory_space<vmem>>, %arg9: memref<4x8x1xf32, #tpu.memory_space<vmem>>, %arg10: memref<4x8x1xf32, #tpu.memory_space<vmem>>, %arg11: memref<4x8x8xf32, #tpu.memory_space<vmem>>) attributes {dimension_semantics = [#tpu.dimension_semantics<parallel>, #tpu.dimension_semantics<parallel>, #tpu.dimension_semantics<arbitrary>], iteration_bounds = array<i64: 2, 1, 1>, scalar_prefetch = 0 : i64, scratch_operands = 3 : i64, tpu.core_type = #tpu.core_type<tc>, window_params = [{transform_indices = @transform_0, window_bounds = array<i64: 1, 4, 8, 8>}, {transform_indices = @transform_1, window_bounds = array<i64: 1, 4, 8, 8>}, {transform_indices = @transform_2, window_bounds = array<i64: 1, 4, 8, 8>}, {pipeline_mode = #tpu.pipeline_mode<synchronous>, transform_indices = @transform_3, window_bounds = array<i64: 4, 8, 32>}, {pipeline_mode = #tpu.pipeline_mode<synchronous>, transform_indices = @transform_4, window_bounds = array<i64: 1, 32>}, {transform_indices = @transform_5, window_bounds = array<i64: 1, 8, 32>}]} {
    %c0_i32 = arith.constant 0 : i32
    %0 = arith.cmpi eq, %arg2, %c0_i32 : i32
    %1 = arith.extui %0 : i1 to i32
    %c0_i32_0 = arith.constant 0 : i32
    %2 = arith.cmpi ne, %1, %c0_i32_0 : i32
    scf.if %2 {
      %cst_36 = arith.constant 0xFF800000 : f32
      %38 = vector.broadcast %cst_36 : f32 to vector<4x8x1xf32>
      %c0_37 = arith.constant 0 : index
      %c0_38 = arith.constant 0 : index
      %c0_39 = arith.constant 0 : index
      %39 = vector.load %arg9[%c0_37, %c0_38, %c0_39] : memref<4x8x1xf32, #tpu.memory_space<vmem>>, vector<4x8x1xf32>
      tpu.vector_store %arg9[%c0_37, %c0_38, %c0_39], %38 {strides = array<i32>} : memref<4x8x1xf32, #tpu.memory_space<vmem>>, vector<4x8x1xf32>,
      %cst_40 = arith.constant 0.000000e+00 : f32
      %40 = vector.broadcast %cst_40 : f32 to vector<4x8x1xf32>
      %c0_41 = arith.constant 0 : index
      %c0_42 = arith.constant 0 : index
      %c0_43 = arith.constant 0 : index
      %41 = vector.load %arg10[%c0_41, %c0_42, %c0_43] : memref<4x8x1xf32, #tpu.memory_space<vmem>>, vector<4x8x1xf32>
      tpu.vector_store %arg10[%c0_41, %c0_42, %c0_43], %40 {strides = array<i32>} : memref<4x8x1xf32, #tpu.memory_space<vmem>>, vector<4x8x1xf32>,
      %cst_44 = arith.constant 0.000000e+00 : f32
      %42 = vector.broadcast %cst_44 : f32 to vector<4x8x8xf32>
      %c0_45 = arith.constant 0 : index
      %c0_46 = arith.constant 0 : index
      %c0_47 = arith.constant 0 : index
      %43 = vector.load %arg11[%c0_45, %c0_46, %c0_47] : memref<4x8x8xf32, #tpu.memory_space<vmem>>, vector<4x8x8xf32>
      tpu.vector_store %arg11[%c0_45, %c0_46, %c0_47], %42 {strides = array<i32>} : memref<4x8x8xf32, #tpu.memory_space<vmem>>, vector<4x8x8xf32>,
    } else {
    }
    %c0 = arith.constant 0 : index
    %c0_1 = arith.constant 0 : index
    %c0_2 = arith.constant 0 : index
    %c0_3 = arith.constant 0 : index
    %3 = vector.load %arg3[%c0, %c0_1, %c0_2, %c0_3] : memref<1x4x8x8xbf16, #tpu.memory_space<vmem>>, vector<1x4x8x8xbf16>
    %4 = vector.shape_cast %3 : vector<1x4x8x8xbf16> to vector<4x8x8xbf16>
    %cst = arith.constant 3.535160e-01 : bf16
    %5 = vector.broadcast %cst : bf16 to vector<4x8x8xbf16>
    %6 = arith.mulf %4, %5 : vector<4x8x8xbf16>
    %c0_4 = arith.constant 0 : index
    %c0_5 = arith.constant 0 : index
    %c0_6 = arith.constant 0 : index
    %c0_7 = arith.constant 0 : index
    %7 = vector.load %arg4[%c0_4, %c0_5, %c0_6, %c0_7] : memref<1x4x8x8xbf16, #tpu.memory_space<vmem>>, vector<1x4x8x8xbf16>
    %8 = vector.shape_cast %7 : vector<1x4x8x8xbf16> to vector<4x8x8xbf16>
    %c0_8 = arith.constant 0 : index
    %c0_9 = arith.constant 0 : index
    %c0_10 = arith.constant 0 : index
    %c0_11 = arith.constant 0 : index
    %9 = vector.load %arg5[%c0_8, %c0_9, %c0_10, %c0_11] : memref<1x4x8x8xbf16, #tpu.memory_space<vmem>>, vector<1x4x8x8xbf16>
    %10 = vector.shape_cast %9 : vector<1x4x8x8xbf16> to vector<4x8x8xbf16>
    "tpu.trace_start"() <{level = 10 : i32, message = "hqd,hkd->hqk"}> : () -> ()
    %cst_12 = arith.constant dense<0.000000e+00> : vector<4x8x8xf32>
    %11 = tpu.matmul %6, %8, %cst_12 {dimension_numbers = #tpu.dot_dimension_numbers<[2], [2], [1], [1], [0, 0, 0, 1, 1, 1], [0], [0]>} : vector<4x8x8xbf16>, vector<4x8x8xbf16>, vector<4x8x8xf32> -> vector<4x8x8xf32>
    "tpu.trace_stop"() : () -> ()
    %c0_13 = arith.constant 0 : index
    %c0_14 = arith.constant 0 : index
    %c0_15 = arith.constant 0 : index
    %12 = vector.load %arg9[%c0_13, %c0_14, %c0_15] : memref<4x8x1xf32, #tpu.memory_space<vmem>>, vector<4x8x1xf32>
    %cst_16 = arith.constant dense<0xFF800000> : vector<4x8xf32>
    %13 = vector.multi_reduction <maximumf>, %11, %cst_16 [2] : vector<4x8x8xf32> to vector<4x8xf32>
    %14 = vector.shape_cast %13 : vector<4x8xf32> to vector<4x8x1xf32>
    %15 = arith.maximumf %12, %14 : vector<4x8x1xf32>
    %16 = arith.subf %12, %15 : vector<4x8x1xf32>
    %17 = math.exp %16 : vector<4x8x1xf32>
    %18 = vector.broadcast %15 : vector<4x8x1xf32> to vector<4x8x8xf32>
    %19 = arith.subf %11, %18 : vector<4x8x8xf32>
    %20 = math.exp %19 : vector<4x8x8xf32>
    %c0_17 = arith.constant 0 : index
    %c0_18 = arith.constant 0 : index
    %c0_19 = arith.constant 0 : index
    %21 = vector.load %arg10[%c0_17, %c0_18, %c0_19] : memref<4x8x1xf32, #tpu.memory_space<vmem>>, vector<4x8x1xf32>
    %22 = arith.mulf %17, %21 : vector<4x8x1xf32>
    %cst_20 = arith.constant dense<0.000000e+00> : vector<4x8xf32>
    %23 = vector.multi_reduction <add>, %20, %cst_20 [2] : vector<4x8x8xf32> to vector<4x8xf32>
    %24 = vector.shape_cast %23 : vector<4x8xf32> to vector<4x8x1xf32>
    %25 = arith.addf %22, %24 : vector<4x8x1xf32>
    %c0_21 = arith.constant 0 : index
    %c0_22 = arith.constant 0 : index
    %c0_23 = arith.constant 0 : index
    %26 = vector.load %arg10[%c0_21, %c0_22, %c0_23] : memref<4x8x1xf32, #tpu.memory_space<vmem>>, vector<4x8x1xf32>
    tpu.vector_store %arg10[%c0_21, %c0_22, %c0_23], %25 {strides = array<i32>} : memref<4x8x1xf32, #tpu.memory_space<vmem>>, vector<4x8x1xf32>,
    %c0_24 = arith.constant 0 : index
    %c0_25 = arith.constant 0 : index
    %c0_26 = arith.constant 0 : index
    %27 = vector.load %arg11[%c0_24, %c0_25, %c0_26] : memref<4x8x8xf32, #tpu.memory_space<vmem>>, vector<4x8x8xf32>
    %28 = vector.broadcast %17 : vector<4x8x1xf32> to vector<4x8x8xf32>
    %29 = arith.mulf %28, %27 : vector<4x8x8xf32>
    %30 = arith.truncf %20 : vector<4x8x8xf32> to vector<4x8x8xbf16>
    "tpu.trace_start"() <{level = 10 : i32, message = "hqk,hkd->hqd"}> : () -> ()
    %cst_27 = arith.constant dense<0.000000e+00> : vector<4x8x8xf32>
    %31 = tpu.matmul %30, %10, %cst_27 {dimension_numbers = #tpu.dot_dimension_numbers<[2], [1], [1], [2], [0, 0, 0, 1, 1, 2], [0], [0]>} : vector<4x8x8xbf16>, vector<4x8x8xbf16>, vector<4x8x8xf32> -> vector<4x8x8xf32>
    "tpu.trace_stop"() : () -> ()
    %32 = arith.addf %29, %31 : vector<4x8x8xf32>
    %c0_28 = arith.constant 0 : index
    %c0_29 = arith.constant 0 : index
    %c0_30 = arith.constant 0 : index
    %33 = vector.load %arg11[%c0_28, %c0_29, %c0_30] : memref<4x8x8xf32, #tpu.memory_space<vmem>>, vector<4x8x8xf32>
    tpu.vector_store %arg11[%c0_28, %c0_29, %c0_30], %32 {strides = array<i32>} : memref<4x8x8xf32, #tpu.memory_space<vmem>>, vector<4x8x8xf32>,
    %c0_31 = arith.constant 0 : index
    %c0_32 = arith.constant 0 : index
    %c0_33 = arith.constant 0 : index
    %34 = vector.load %arg9[%c0_31, %c0_32, %c0_33] : memref<4x8x1xf32, #tpu.memory_space<vmem>>, vector<4x8x1xf32>
    tpu.vector_store %arg9[%c0_31, %c0_32, %c0_33], %15 {strides = array<i32>} : memref<4x8x1xf32, #tpu.memory_space<vmem>>, vector<4x8x1xf32>,
    %c0_i32_34 = arith.constant 0 : i32
    %35 = arith.cmpi eq, %arg2, %c0_i32_34 : i32
    %36 = arith.extui %35 : i1 to i32
    %c0_i32_35 = arith.constant 0 : i32
    %37 = arith.cmpi ne, %36, %c0_i32_35 : i32
    scf.if %37 {
      %c0_36 = arith.constant 0 : index
      %c0_37 = arith.constant 0 : index
      %c0_38 = arith.constant 0 : index
      %38 = vector.load %arg11[%c0_36, %c0_37, %c0_38] : memref<4x8x8xf32, #tpu.memory_space<vmem>>, vector<4x8x8xf32>
      %c0_39 = arith.constant 0 : index
      %c0_40 = arith.constant 0 : index
      %c0_41 = arith.constant 0 : index
      %39 = vector.load %arg10[%c0_39, %c0_40, %c0_41] : memref<4x8x1xf32, #tpu.memory_space<vmem>>, vector<4x8x1xf32>
      %40 = tpu.reciprocal %39 {approx = true} : vector<4x8x1xf32> -> vector<4x8x1xf32>
      %41 = vector.broadcast %40 : vector<4x8x1xf32> to vector<4x8x8xf32>
      %42 = arith.mulf %38, %41 : vector<4x8x8xf32>
      %43 = arith.truncf %42 : vector<4x8x8xf32> to vector<4x8x8xbf16>
      %c0_42 = arith.constant 0 : index
      %c0_43 = arith.constant 0 : index
      %c0_44 = arith.constant 0 : index
      %44 = vector.load %arg6[%c0_42, %c0_43, %c0_44] : memref<4x8x32xbf16, #tpu.memory_space<vmem>>, vector<4x8x32xbf16>
      "tpu.trace_start"() <{level = 10 : i32, message = "hqd,hdf->hqf"}> : () -> ()
      %cst_45 = arith.constant dense<0.000000e+00> : vector<4x8x32xf32>
      %45 = tpu.matmul %43, %44, %cst_45 {dimension_numbers = #tpu.dot_dimension_numbers<[2], [1], [1], [2], [0, 0, 0, 1, 1, 2], [0], [0]>} : vector<4x8x8xbf16>, vector<4x8x32xbf16>, vector<4x8x32xf32> -> vector<4x8x32xf32>
      "tpu.trace_stop"() : () -> ()
      %cst_46 = arith.constant dense<0.000000e+00> : vector<8x32xf32>
      %46 = vector.multi_reduction <add>, %45, %cst_46 [0] : vector<4x8x32xf32> to vector<8x32xf32>
      %c0_47 = arith.constant 0 : index
      %c0_48 = arith.constant 0 : index
      %47 = vector.load %arg7[%c0_47, %c0_48] : memref<1x32xf32, #tpu.memory_space<vmem>>, vector<1x32xf32>
      %48 = vector.broadcast %47 : vector<1x32xf32> to vector<8x32xf32>
      %49 = arith.addf %46, %48 : vector<8x32xf32>
      %c0_49 = arith.constant 0 : index
      %c0_50 = arith.constant 0 : index
      %c0_51 = arith.constant 0 : index
      %50 = vector.load %arg8[%c0_49, %c0_50, %c0_51] : memref<1x8x32xf32, #tpu.memory_space<vmem>>, vector<1x8x32xf32>
      %51 = vector.shape_cast %50 : vector<1x8x32xf32> to vector<8x32xf32>
      %52 = vector.shape_cast %49 : vector<8x32xf32> to vector<1x8x32xf32>
      tpu.vector_store %arg8[%c0_49, %c0_50, %c0_51], %52 {strides = array<i32>} : memref<1x8x32xf32, #tpu.memory_space<vmem>>, vector<1x8x32xf32>,
    } else {
    }
    return
  }
  func.func @transform_0(%arg0: i32, %arg1: i32, %arg2: i32) -> (i32, i32, i32, i32) {
    %c0_i32 = arith.constant 0 : i32
    %c0_i32_0 = arith.constant 0 : i32
    %c0_i32_1 = arith.constant 0 : i32
    return %arg0, %c0_i32, %arg1, %c0_i32_0 : i32, i32, i32, i32
  }
  func.func @transform_1(%arg0: i32, %arg1: i32, %arg2: i32) -> (i32, i32, i32, i32) {
    %c0_i32 = arith.constant 0 : i32
    %c0_i32_0 = arith.constant 0 : i32
    %c0_i32_1 = arith.constant 0 : i32
    return %arg0, %c0_i32, %arg2, %c0_i32_0 : i32, i32, i32, i32
  }
  func.func @transform_2(%arg0: i32, %arg1: i32, %arg2: i32) -> (i32, i32, i32, i32) {
    %c0_i32 = arith.constant 0 : i32
    %c0_i32_0 = arith.constant 0 : i32
    %c0_i32_1 = arith.constant 0 : i32
    return %arg0, %c0_i32, %arg2, %c0_i32_0 : i32, i32, i32, i32
  }
  func.func @transform_3(%arg0: i32, %arg1: i32, %arg2: i32) -> (i32, i32, i32) {
    %c0_i32 = arith.constant 0 : i32
    %c0_i32_0 = arith.constant 0 : i32
    %c0_i32_1 = arith.constant 0 : i32
    %c0_i32_2 = arith.constant 0 : i32
    return %c0_i32, %c0_i32_0, %c0_i32_1 : i32, i32, i32
  }
  func.func @transform_4(%arg0: i32, %arg1: i32, %arg2: i32) -> (i32, i32) {
    %c0_i32 = arith.constant 0 : i32
    %c0_i32_0 = arith.constant 0 : i32
    %c0_i32_1 = arith.constant 0 : i32
    return %c0_i32, %c0_i32_0 : i32, i32
  }
  func.func @transform_5(%arg0: i32, %arg1: i32, %arg2: i32) -> (i32, i32, i32) {
    %c0_i32 = arith.constant 0 : i32
    %c0_i32_0 = arith.constant 0 : i32
    return %arg0, %arg1, %c0_i32 : i32, i32, i32
  }
}

</mosaic_0001>

<llo_original>
// kernel: attention_forward.2
$region0: #{attention_forward.2}
  #allocation0 [shape = 'u32[]', space=smem, size = 0x4, offset = 0x4, fixed_abs, tag = 'smem constant byte address 0x4 - core index']
  #allocation1 [shape = 'u32[144,128]{1,0:T(1,128)}', space=vmem, size = 0x12000, scoped, tag = 'internal scratch']
  #allocation2 [shape = 'f32[16,32]{1,0:T(8,128)}', space=vmem, size = 0x2000, scoped, tag = 'scratch operand']
  #allocation3 [shape = 'f32[16,32]{1,0:T(8,128)}', space=vmem, size = 0x2000, scoped, tag = 'scratch operand']
  #allocation4 [shape = 'f32[16,32]{1,0:T(8,128)}', space=vmem, size = 0x2000, scoped, tag = 'scratch operand']
  %s0 = inlined_call_operand.vmem [shape: f32[16,32], index: 0, kind: input, shape index: {}]
  %s1 = inlined_call_operand.vmem [shape: f32[16,32], index: 1, kind: input, shape index: {}]
  %s2 = inlined_call_operand.vmem [shape: f32[16,32], index: 2, kind: input, shape index: {}]
  %s3 = inlined_call_operand.vmem [shape: bf16[32,32], index: 3, kind: input, shape index: {}]
  %s4 = inlined_call_operand.vmem [shape: bf16[32,32], index: 4, kind: input, shape index: {}]
  %s5 = inlined_call_operand.vmem [shape: bf16[32,32], index: 5, kind: input, shape index: {}]
  %s6 = inlined_call_operand.vmem [shape: bf16[16,32], index: 6, kind: output, shape index: {0}]
  %s7 = inlined_call_operand.vmem [shape: bf16[16,32], index: 7, kind: output, shape index: {1}]
  %s8 = inlined_call_operand.vmem [shape: bf16[16,32], index: 8, kind: output, shape index: {2}]
  %9 = xla_tuple %s6, %s7, %s8
  %s10 = sld [smem:[#allocation0]]
  $region58: #{attention_forward.2} parent=0
    _
  %s12 = ssub.s32 1, %s10
  %s13 = scalar_select 0, %s12, %s10
  // Predicated region
  $region2: #{attention_forward.2} parent=0 // pred_check
    _
  $region3: #{attention_forward.2} parent=0 // pred_check_branch
    %15 = sbr.rel (0) target = $region5
  $region4: #{attention_forward.2} parent=0 // pred_region
    _
  $region5: #{attention_forward.2} parent=0 // pred_fallthru
    _
  // Predicated region
  $region6: #{attention_forward.2} parent=0 // pred_check
    _
  $region7: #{attention_forward.2} parent=0 // pred_check_branch
    %17 = sbr.rel (0) target = $region9
  $region8: #{attention_forward.2} parent=0 // pred_region
    _
  $region9: #{attention_forward.2} parent=0 // pred_fallthru
    _
  // Predicated region
  $region10: #{attention_forward.2} parent=0 // pred_check
    _
  $region11: #{attention_forward.2} parent=0 // pred_check_branch
    %19 = sbr.rel (0) target = $region13
  $region12: #{attention_forward.2} parent=0 // pred_region
    _
  $region13: #{attention_forward.2} parent=0 // pred_fallthru
    _
  // Predicated region
  $region14: #{attention_forward.2} parent=0 // pred_check
    _
  $region15: #{attention_forward.2} parent=0 // pred_check_branch
    %21 = sbr.rel (0) target = $region17
  $region16: #{attention_forward.2} parent=0 // pred_region
    _
  $region17: #{attention_forward.2} parent=0 // pred_fallthru
    _
  // Predicated region
  $region18: #{attention_forward.2} parent=0 // pred_check
    _
  $region19: #{attention_forward.2} parent=0 // pred_check_branch
    %23 = sbr.rel (0) target = $region21
  $region20: #{attention_forward.2} parent=0 // pred_region
    _
  $region21: #{attention_forward.2} parent=0 // pred_fallthru
    _
  // Predicated region
  $region22: #{attention_forward.2} parent=0 // pred_check
    _
  $region23: #{attention_forward.2} parent=0 // pred_check_branch
    %25 = sbr.rel (0) target = $region25
  $region24: #{attention_forward.2} parent=0 // pred_region
    _
  $region25: #{attention_forward.2} parent=0 // pred_fallthru
    _
  %p27 = scmp.eq.s32.totalorder 0, 0
  // Predicated region
  $region26: #{attention_forward.2} parent=0 // pred_check
    %p28 = pneg %p27
  $region27: #{attention_forward.2} parent=0 // pred_check_branch
    %30 = sbr.rel (%p28) target = $region29
  $region28: #{attention_forward.2} parent=0 // pred_region
    %vm31 = vcmask 261120
    %32 = vst.msk [vmem:[#allocation2] sm:$0xff] %vm31, 0.0
    %33 = vst.msk [vmem:[#allocation2 + $0x8] sm:$0xff] %vm31, 0.0
    %34 = vst.msk [vmem:[#allocation3] sm:$0xff] %vm31, 0.0
    %35 = vst.msk [vmem:[#allocation3 + $0x8] sm:$0xff] %vm31, 0.0
    %36 = vst.msk [vmem:[#allocation4] sm:$0xff] %vm31, 0.0
    %37 = vst.msk [vmem:[#allocation4 + $0x8] sm:$0xff] %vm31, 0.0
  $region29: #{attention_forward.2} parent=0 // pred_fallthru
    _
  %v38 = vld [vmem:[#allocation2] sm:$0xff]
  %v39 = vld [vmem:[#allocation2 + $0x8] sm:$0xff]
  %v40 = vld [vmem:[%s0] sm:$0xff]
  %v41 = vld [vmem:[%s0 + $0x8] sm:$0xff]
  %v42 = vpack.c.bf16 %v41, %v40
  %v43 = vld [vmem:[%s3] sm:$0xf]
  %v44 = vld [vmem:[%s3 + $0x4] sm:$0xf]
  %v45 = vld [vmem:[%s3 + $0x8] sm:$0xf]
  %v46 = vld [vmem:[%s3 + $0xc] sm:$0xf]
  %v51 = vunpack.c.l.b16 %v43
  %v52 = vunpack.c.l.b16 %v44
  %v53 = vunpack.c.l.b16 %v45
  %v54 = vunpack.c.l.b16 %v46
  %v55 = vpack.c.b16 %v52, %v51
  %v56 = vpack.c.b16 %v54, %v53
  %vm57 = vcmask 261120
  %v59 = vsel %vm57, %v42, 0
  %v62 = vsel %vm57, %v55, 0
  %v65 = vsel %vm57, %v56, 0
  %67 = vmatprep.subr.bf16.mxu0 0
  %68 = vmatpush1.bf16.xpose.msra.mxu0 %v62
  %69 = vmatprep.subr.bf16.mxu0 0
  %70 = vmatpush1.bf16.xpose.msra.mxu0 %v65
  %71 = vmatprep.subr.bf16.mxu0 0
  %72 = vmatpush1.bf16.xpose.msra.mxu0 0
  %73 = vmatprep.subr.bf16.mxu0 0
  %74 = vmatpush1.bf16.xpose.msra.mxu0 0
  %75 = vmatprep.subr.bf16.mxu0 0
  %76 = vmatpush1.bf16.xpose.msra.mxu0 0
  %77 = vmatprep.subr.bf16.mxu0 0
  %78 = vmatpush1.bf16.xpose.msra.mxu0 0
  %79 = vmatprep.subr.bf16.mxu0 0
  %80 = vmatpush1.bf16.xpose.msra.mxu0 0
  %81 = vmatprep.subr.bf16.mxu0 0
  %82 = vmatpush1.bf16.xpose.msra.mxu0 0
  %83 = vmatprep.subr.bf16.mxu0 0
  %84 = vmatpush1.bf16.xpose.msra.mxu0 0
  %85 = vmatprep.subr.bf16.mxu0 0
  %86 = vmatpush1.bf16.xpose.msra.mxu0 0
  %87 = vmatprep.subr.bf16.mxu0 0
  %88 = vmatpush1.bf16.xpose.msra.mxu0 0
  %89 = vmatprep.subr.bf16.mxu0 0
  %90 = vmatpush1.bf16.xpose.msra.mxu0 0
  %91 = vmatprep.subr.bf16.mxu0 0
  %92 = vmatpush1.bf16.xpose.msra.mxu0 0
  %93 = vmatprep.subr.bf16.mxu0 0
  %94 = vmatpush1.bf16.xpose.msra.mxu0 0
  %95 = vmatprep.subr.bf16.mxu0 0
  %96 = vmatpush1.bf16.xpose.msra.mxu0 0
  %97 = vmatprep.subr.bf16.mxu0 0
  %98 = vmatpush1.bf16.xpose.msra.mxu0 0
  %99 = vmatprep.mubr.bf16.mxu0 0
  %100 = vmatmul.mubr.bf16.gmra.mrb[0].mxu0 %v59
  %v101 = vpop.f32.mrb[0].mxu0
  %v102 = vadd.f32 0.0, %v101
  %v103 = vpop.f32.mrb[0].mxu0
  %v104 = vpop.f32.mrb[0].mxu0
  %v105 = vadd.f32 0.0, %v104
  %v106 = vpop.f32.mrb[0].mxu0
  %107 = vdwg.mxu0
  %v108 = vadd.f32 %v38, %v102
  %v109 = vadd.f32 %v39, %v105
  %110 = vst.msk [vmem:[#allocation2] sm:$0xff] %vm57, %v108
  %111 = vst.msk [vmem:[#allocation2 + $0x8] sm:$0xff] %vm57, %v109
  %v112 = vld [vmem:[#allocation3] sm:$0xff]
  %v113 = vld [vmem:[#allocation3 + $0x8] sm:$0xff]
  %v114 = vld [vmem:[%s1] sm:$0xff]
  %v115 = vld [vmem:[%s1 + $0x8] sm:$0xff]
  %v116 = vpack.c.bf16 %v115, %v114
  %v117 = vld [vmem:[%s4] sm:$0xf]
  %v118 = vld [vmem:[%s4 + $0x4] sm:$0xf]
  %v119 = vld [vmem:[%s4 + $0x8] sm:$0xf]
  %v120 = vld [vmem:[%s4 + $0xc] sm:$0xf]
  %v125 = vunpack.c.l.b16 %v117
  %v126 = vunpack.c.l.b16 %v118
  %v127 = vunpack.c.l.b16 %v119
  %v128 = vunpack.c.l.b16 %v120
  %v129 = vpack.c.b16 %v126, %v125
  %v130 = vpack.c.b16 %v128, %v127
  %v132 = vsel %vm57, %v116, 0
  %v135 = vsel %vm57, %v129, 0
  %v138 = vsel %vm57, %v130, 0
  %140 = vmatprep.subr.bf16.mxu0 0
  %141 = vmatpush1.bf16.xpose.msra.mxu0 %v135
  %142 = vmatprep.subr.bf16.mxu0 0
  %143 = vmatpush1.bf16.xpose.msra.mxu0 %v138
  %144 = vmatprep.subr.bf16.mxu0 0
  %145 = vmatpush1.bf16.xpose.msra.mxu0 0
  %146 = vmatprep.subr.bf16.mxu0 0
  %147 = vmatpush1.bf16.xpose.msra.mxu0 0
  %148 = vmatprep.subr.bf16.mxu0 0
  %149 = vmatpush1.bf16.xpose.msra.mxu0 0
  %150 = vmatprep.subr.bf16.mxu0 0
  %151 = vmatpush1.bf16.xpose.msra.mxu0 0
  %152 = vmatprep.subr.bf16.mxu0 0
  %153 = vmatpush1.bf16.xpose.msra.mxu0 0
  %154 = vmatprep.subr.bf16.mxu0 0
  %155 = vmatpush1.bf16.xpose.msra.mxu0 0
  %156 = vmatprep.subr.bf16.mxu0 0
  %157 = vmatpush1.bf16.xpose.msra.mxu0 0
  %158 = vmatprep.subr.bf16.mxu0 0
  %159 = vmatpush1.bf16.xpose.msra.mxu0 0
  %160 = vmatprep.subr.bf16.mxu0 0
  %161 = vmatpush1.bf16.xpose.msra.mxu0 0
  %162 = vmatprep.subr.bf16.mxu0 0
  %163 = vmatpush1.bf16.xpose.msra.mxu0 0
  %164 = vmatprep.subr.bf16.mxu0 0
  %165 = vmatpush1.bf16.xpose.msra.mxu0 0
  %166 = vmatprep.subr.bf16.mxu0 0
  %167 = vmatpush1.bf16.xpose.msra.mxu0 0
  %168 = vmatprep.subr.bf16.mxu0 0
  %169 = vmatpush1.bf16.xpose.msra.mxu0 0
  %170 = vmatprep.subr.bf16.mxu0 0
  %171 = vmatpush1.bf16.xpose.msra.mxu0 0
  %172 = vmatprep.mubr.bf16.mxu0 0
  %173 = vmatmul.mubr.bf16.gmra.mrb[0].mxu0 %v132
  %v174 = vpop.f32.mrb[0].mxu0
  %v175 = vadd.f32 0.0, %v174
  %v176 = vpop.f32.mrb[0].mxu0
  %v177 = vpop.f32.mrb[0].mxu0
  %v178 = vadd.f32 0.0, %v177
  %v179 = vpop.f32.mrb[0].mxu0
  %180 = vdwg.mxu0
  %v181 = vadd.f32 %v112, %v175
  %v182 = vadd.f32 %v113, %v178
  %183 = vst.msk [vmem:[#allocation3] sm:$0xff] %vm57, %v181
  %184 = vst.msk [vmem:[#allocation3 + $0x8] sm:$0xff] %vm57, %v182
  %v185 = vld [vmem:[#allocation4] sm:$0xff]
  %v186 = vld [vmem:[#allocation4 + $0x8] sm:$0xff]
  %v187 = vld [vmem:[%s2] sm:$0xff]
  %v188 = vld [vmem:[%s2 + $0x8] sm:$0xff]
  %v189 = vpack.c.bf16 %v188, %v187
  %v190 = vld [vmem:[%s5] sm:$0xf]
  %v191 = vld [vmem:[%s5 + $0x4] sm:$0xf]
  %v192 = vld [vmem:[%s5 + $0x8] sm:$0xf]
  %v193 = vld [vmem:[%s5 + $0xc] sm:$0xf]
  %v198 = vunpack.c.l.b16 %v190
  %v199 = vunpack.c.l.b16 %v191
  %v200 = vunpack.c.l.b16 %v192
  %v201 = vunpack.c.l.b16 %v193
  %v202 = vpack.c.b16 %v199, %v198
  %v203 = vpack.c.b16 %v201, %v200
  %v205 = vsel %vm57, %v189, 0
  %v208 = vsel %vm57, %v202, 0
  %v211 = vsel %vm57, %v203, 0
  %213 = vmatprep.subr.bf16.mxu0 0
  %214 = vmatpush1.bf16.xpose.msra.mxu0 %v208
  %215 = vmatprep.subr.bf16.mxu0 0
  %216 = vmatpush1.bf16.xpose.msra.mxu0 %v211
  %217 = vmatprep.subr.bf16.mxu0 0
  %218 = vmatpush1.bf16.xpose.msra.mxu0 0
  %219 = vmatprep.subr.bf16.mxu0 0
  %220 = vmatpush1.bf16.xpose.msra.mxu0 0
  %221 = vmatprep.subr.bf16.mxu0 0
  %222 = vmatpush1.bf16.xpose.msra.mxu0 0
  %223 = vmatprep.subr.bf16.mxu0 0
  %224 = vmatpush1.bf16.xpose.msra.mxu0 0
  %225 = vmatprep.subr.bf16.mxu0 0
  %226 = vmatpush1.bf16.xpose.msra.mxu0 0
  %227 = vmatprep.subr.bf16.mxu0 0
  %228 = vmatpush1.bf16.xpose.msra.mxu0 0
  %229 = vmatprep.subr.bf16.mxu0 0
  %230 = vmatpush1.bf16.xpose.msra.mxu0 0
  %231 = vmatprep.subr.bf16.mxu0 0
  %232 = vmatpush1.bf16.xpose.msra.mxu0 0
  %233 = vmatprep.subr.bf16.mxu0 0
  %234 = vmatpush1.bf16.xpose.msra.mxu0 0
  %235 = vmatprep.subr.bf16.mxu0 0
  %236 = vmatpush1.bf16.xpose.msra.mxu0 0
  %237 = vmatprep.subr.bf16.mxu0 0
  %238 = vmatpush1.bf16.xpose.msra.mxu0 0
  %239 = vmatprep.subr.bf16.mxu0 0
  %240 = vmatpush1.bf16.xpose.msra.mxu0 0
  %241 = vmatprep.subr.bf16.mxu0 0
  %242 = vmatpush1.bf16.xpose.msra.mxu0 0
  %243 = vmatprep.subr.bf16.mxu0 0
  %244 = vmatpush1.bf16.xpose.msra.mxu0 0
  %245 = vmatprep.mubr.bf16.mxu0 0
  %246 = vmatmul.mubr.bf16.gmra.mrb[0].mxu0 %v205
  %v247 = vpop.f32.mrb[0].mxu0
  %v248 = vadd.f32 0.0, %v247
  %v249 = vpop.f32.mrb[0].mxu0
  %v250 = vpop.f32.mrb[0].mxu0
  %v251 = vadd.f32 0.0, %v250
  %v252 = vpop.f32.mrb[0].mxu0
  %253 = vdwg.mxu0
  %v254 = vadd.f32 %v185, %v248
  %v255 = vadd.f32 %v186, %v251
  %256 = vst.msk [vmem:[#allocation4] sm:$0xff] %vm57, %v254
  %257 = vst.msk [vmem:[#allocation4 + $0x8] sm:$0xff] %vm57, %v255
  // Predicated region
  $region30: #{attention_forward.2} parent=0 // pred_check
    %p258 = pneg %p27
  $region31: #{attention_forward.2} parent=0 // pred_check_branch
    %260 = sbr.rel (%p258) target = $region33
  $region32: #{attention_forward.2} parent=0 // pred_region
    %v261 = vld [vmem:[#allocation2] sm:$0xff]
    %v262 = vld [vmem:[#allocation2 + $0x8] sm:$0xff]
    %v263 = vpack.c.bf16 %v262, %v261
    %v265 = vunpack.c.l.b16 %v263
    %v266 = vunpack.c.h.b16 %v263
    %v267 = vpack.c.b16 %v265, %v265
    %v268 = vpack.c.b16 %v266, %v266
    %vm271 = vcmask 257024
    %272 = vst.msk [vmem:[%s6] sm:$0xf] %vm271, %v267
    %273 = vst.msk [vmem:[%s6 + $0x4] sm:$0xf] %vm271, %v268
    %v274 = vld [vmem:[#allocation3] sm:$0xff]
    %v275 = vld [vmem:[#allocation3 + $0x8] sm:$0xff]
    %v276 = vpack.c.bf16 %v275, %v274
    %v278 = vunpack.c.l.b16 %v276
    %v279 = vunpack.c.h.b16 %v276
    %v280 = vpack.c.b16 %v278, %v278
    %v281 = vpack.c.b16 %v279, %v279
    %284 = vst.msk [vmem:[%s7] sm:$0xf] %vm271, %v280
    %285 = vst.msk [vmem:[%s7 + $0x4] sm:$0xf] %vm271, %v281
    %v286 = vld [vmem:[#allocation4] sm:$0xff]
    %v287 = vld [vmem:[#allocation4 + $0x8] sm:$0xff]
    %v288 = vpack.c.bf16 %v287, %v286
    %v290 = vunpack.c.l.b16 %v288
    %v291 = vunpack.c.h.b16 %v288
    %v292 = vpack.c.b16 %v290, %v290
    %v293 = vpack.c.b16 %v291, %v291
    %296 = vst.msk [vmem:[%s8] sm:$0xf] %vm271, %v292
    %297 = vst.msk [vmem:[%s8 + $0x4] sm:$0xf] %vm271, %v293
  $region33: #{attention_forward.2} parent=0 // pred_fallthru
    _
  // Predicated region
  $region34: #{attention_forward.2} parent=0 // pred_check
    _
  $region35: #{attention_forward.2} parent=0 // pred_check_branch
    %299 = sbr.rel (0) target = $region37
  $region36: #{attention_forward.2} parent=0 // pred_region
    _
  $region37: #{attention_forward.2} parent=0 // pred_fallthru
    _
  // Predicated region
  $region38: #{attention_forward.2} parent=0 // pred_check
    _
  $region39: #{attention_forward.2} parent=0 // pred_check_branch
    %301 = sbr.rel (0) target = $region41
  $region40: #{attention_forward.2} parent=0 // pred_region
    _
  $region41: #{attention_forward.2} parent=0 // pred_fallthru
    _
  // Predicated region
  $region42: #{attention_forward.2} parent=0 // pred_check
    _
  $region43: #{attention_forward.2} parent=0 // pred_check_branch
    %303 = sbr.rel (0) target = $region45
  $region44: #{attention_forward.2} parent=0 // pred_region
    _
  $region45: #{attention_forward.2} parent=0 // pred_fallthru
    _
  // Predicated region
  $region46: #{attention_forward.2} parent=0 // pred_check
    _
  $region47: #{attention_forward.2} parent=0 // pred_check_branch
    %305 = sbr.rel (0) target = $region49
  $region48: #{attention_forward.2} parent=0 // pred_region
    _
  $region49: #{attention_forward.2} parent=0 // pred_fallthru
    _
  // Predicated region
  $region50: #{attention_forward.2} parent=0 // pred_check
    _
  $region51: #{attention_forward.2} parent=0 // pred_check_branch
    %307 = sbr.rel (0) target = $region53
  $region52: #{attention_forward.2} parent=0 // pred_region
    _
  $region53: #{attention_forward.2} parent=0 // pred_fallthru
    _
  // Predicated region
  $region54: #{attention_forward.2} parent=0 // pred_check
    _
  $region55: #{attention_forward.2} parent=0 // pred_check_branch
    %309 = sbr.rel (0) target = $region57
  $region56: #{attention_forward.2} parent=0 // pred_region
    _
  $region57: #{attention_forward.2} parent=0 // pred_fallthru
    _

// kernel: attention_forward.3
$region0: #{attention_forward.3}
  #allocation0 [shape = 'u32[]', space=smem, size = 0x4, offset = 0x4, fixed_abs, tag = 'smem constant byte address 0x4 - core index']
  #allocation1 [shape = 'u32[144,128]{1,0:T(1,128)}', space=vmem, size = 0x12000, scoped, tag = 'internal scratch']
  #allocation2 [shape = 'f32[4,8,1]{2,1,0:T(8,128)}', space=vmem, size = 0x4000, scoped, tag = 'scratch operand']
  #allocation3 [shape = 'f32[4,8,1]{2,1,0:T(8,128)}', space=vmem, size = 0x4000, scoped, tag = 'scratch operand']
  #allocation4 [shape = 'f32[4,8,8]{2,1,0:T(8,128)}', space=vmem, size = 0x4000, scoped, tag = 'scratch operand']
  %s0 = inlined_call_operand.vmem [shape: bf16[2,4,8,8], index: 0, kind: input, shape index: {}]
  %s1 = inlined_call_operand.vmem [shape: bf16[2,4,8,8], index: 1, kind: input, shape index: {}]
  %s2 = inlined_call_operand.vmem [shape: bf16[2,4,8,8], index: 2, kind: input, shape index: {}]
  %s3 = inlined_call_operand.vmem [shape: bf16[4,8,32], index: 3, kind: input, shape index: {}]
  %s4 = inlined_call_operand.vmem [shape: f32[1,32], index: 4, kind: input, shape index: {}]
  %s5 = inlined_call_operand.hbm [shape: f32[2,8,32], index: 5, kind: output, shape index: {}]
  %s6 = sld [smem:[#allocation0]]
  $region61: #{attention_forward.3} parent=0
    _
  %s8 = ssub.s32 1, %s6
  %s9 = scalar_select 0, %s8, %s6
  $region1: #{attention_forward.3} parent=0
    #allocation5 [shape = 'u8[8192]{0}', space=vmem, size = 0x2000, scoped, tag = 'output window, operand 0']
    #allocation6 [shape = 's32[2]{0}', space=sflag, size = 0x8, scoped, tag = 'scoped memory for attention_forward.3']
    %10 = vsyncpa [#allocation6], 0
    %s11 = scalar_lea.sflag [#allocation6], 1
    %12 = vsyncpa %s11, 0
    loop: start=0, step=1, limit=4
    $region2: #{attention_forward.3} parent=1 // loop_pre_header
      _
    $region3: #{attention_forward.3} parent=1 // loop_header
      %s14 = sphi 0, %s18
      %p15 = scmp.ge.s32.totalorder %s14, 4
      %s21 = sphi 0, %s40
      %s22 = sphi 0, %s36
      %s23 = sphi 0, %s32
      %s24 = sphi 0, %s21
      %s25 = sphi 0, %s22
      %s26 = sphi 0, %s23
      %s27 = sphi 0, %s24
      %s28 = sphi 0, %s25
      %s29 = sphi 0, %s26
      %s45 = sphi 0, %s47
      %s48 = sphi 0, %s45
      %s49 = sphi 0, %s48
      %s65 = sphi 0, %s49
      %s73 = sphi 0, %s75
      %s76 = sphi 0, %s73
      %s77 = sphi 0, %s76
      %s93 = sphi 0, %s77
      %s101 = sphi 0, %s103
      %s104 = sphi 0, %s101
      %s105 = sphi 0, %s104
      %s121 = sphi 0, %s105
      %s125 = sphi 0, %s125
      %s127 = sphi 0, %s125
      %s128 = sphi 0, %s127
      %s142 = sphi 0, %s128
      %s146 = sphi 0, %s146
      %s148 = sphi 0, %s146
      %s149 = sphi 0, %s148
      %s163 = sphi 0, %s149
      %s171 = sphi 0, %s173
      %s174 = sphi 0, %s171
      %s175 = sphi 0, %s174
      %s191 = sphi 0, %s175
    $region4: #{attention_forward.3} parent=1 // loop_header_branch
      %17 = sbr.rel (%p15) target = $region8
    $region5: #{attention_forward.3} parent=1 // loop_body
      %s19 = ssub.s32 %s14, 1
      %s20 = ssub.s32 %s14, 2
      %s30 = sadd.s32 1, %s23
      %p31 = scmp.ge.s32.totalorder %s30, 1
      %s32 = scalar_select %p31, 0, %s30
      %s33 = sadd.s32 1, %s22
      %s34 = scalar_select %p31, %s33, %s22
      %p35 = scmp.ge.s32.totalorder %s34, 1
      %s36 = scalar_select %p35, 0, %s34
      %s37 = sadd.s32 1, %s21
      %s38 = scalar_select %p35, %s37, %s21
      %p39 = scmp.ge.s32.totalorder %s38, 2
      %s40 = scalar_select %p39, 0, %s38
      %s41 = ssub.s32 %s21, %s40
      %s42 = ssub.s32 %s22, %s36
      %s43 = sor.u32 %s41, %s42
      %p44 = scmp.eq.s32.totalorder %s43, 0
      %s46 = sadd.s32 %s45, 1
      %s47 = scalar_select %p44, %s45, %s46
      %p50 = pneg %p44
      %p51 = scmp.eq.s32.totalorder %s14, 1
      %p52 = por %p50, %p51
      %p53 = scmp.ne.s32.totalorder %s45, %s48
      %p54 = scmp.eq.s32.totalorder %s14, 0
      %p55 = por %p53, %p54
      %p56 = scmp.ne.s32.totalorder %s45, %s48
      %p57 = scmp.eq.s32.totalorder %s19, 1
      %p58 = por %p56, %p57
      %p59 = scmp.ne.s32.totalorder %s48, %s49
      %p60 = scmp.eq.s32.totalorder %s19, 0
      %p61 = por %p59, %p60
      %p62 = scmp.ne.s32.totalorder %s48, %s49
      %p63 = scmp.eq.s32.totalorder %s20, 1
      %p64 = por %p62, %p63
      %p66 = scmp.ne.s32.totalorder %s49, %s65
      %p67 = scmp.eq.s32.totalorder %s20, 0
      %p68 = por %p66, %p67
      %s69 = ssub.s32 %s21, %s40
      %s70 = ssub.s32 %s23, %s32
      %s71 = sor.u32 %s69, %s70
      %p72 = scmp.eq.s32.totalorder %s71, 0
      %s74 = sadd.s32 %s73, 1
      %s75 = scalar_select %p72, %s73, %s74
      %p78 = pneg %p72
      %p79 = scmp.eq.s32.totalorder %s14, 1
      %p80 = por %p78, %p79
      %p81 = scmp.ne.s32.totalorder %s73, %s76
      %p82 = scmp.eq.s32.totalorder %s14, 0
      %p83 = por %p81, %p82
      %p84 = scmp.ne.s32.totalorder %s73, %s76
      %p85 = scmp.eq.s32.totalorder %s19, 1
      %p86 = por %p84, %p85
      %p87 = scmp.ne.s32.totalorder %s76, %s77
      %p88 = scmp.eq.s32.totalorder %s19, 0
      %p89 = por %p87, %p88
      %p90 = scmp.ne.s32.totalorder %s76, %s77
      %p91 = scmp.eq.s32.totalorder %s20, 1
      %p92 = por %p90, %p91
      %p94 = scmp.ne.s32.totalorder %s77, %s93
      %p95 = scmp.eq.s32.totalorder %s20, 0
      %p96 = por %p94, %p95
      %s97 = ssub.s32 %s21, %s40
      %s98 = ssub.s32 %s23, %s32
      %s99 = sor.u32 %s97, %s98
      %p100 = scmp.eq.s32.totalorder %s99, 0
      %s102 = sadd.s32 %s101, 1
      %s103 = scalar_select %p100, %s101, %s102
      %p106 = pneg %p100
      %p107 = scmp.eq.s32.totalorder %s14, 1
      %p108 = por %p106, %p107
      %p109 = scmp.ne.s32.totalorder %s101, %s104
      %p110 = scmp.eq.s32.totalorder %s14, 0
      %p111 = por %p109, %p110
      %p112 = scmp.ne.s32.totalorder %s101, %s104
      %p113 = scmp.eq.s32.totalorder %s19, 1
      %p114 = por %p112, %p113
      %p115 = scmp.ne.s32.totalorder %s104, %s105
      %p116 = scmp.eq.s32.totalorder %s19, 0
      %p117 = por %p115, %p116
      %p118 = scmp.ne.s32.totalorder %s104, %s105
      %p119 = scmp.eq.s32.totalorder %s20, 1
      %p120 = por %p118, %p119
      %p122 = scmp.ne.s32.totalorder %s105, %s121
      %p123 = scmp.eq.s32.totalorder %s20, 0
      %p124 = por %p122, %p123
      %s126 = sadd.s32 %s125, 1
      %p129 = scmp.eq.s32.totalorder %s14, 1
      %p130 = scmp.ne.s32.totalorder %s125, %s127
      %p131 = scmp.eq.s32.totalorder %s14, 0
      %p132 = por %p130, %p131
      %p133 = scmp.ne.s32.totalorder %s125, %s127
      %p134 = scmp.eq.s32.totalorder %s19, 1
      %p135 = por %p133, %p134
      %p136 = scmp.ne.s32.totalorder %s127, %s128
      %p137 = scmp.eq.s32.totalorder %s19, 0
      %p138 = por %p136, %p137
      %p139 = scmp.ne.s32.totalorder %s127, %s128
      %p140 = scmp.eq.s32.totalorder %s20, 1
      %p141 = por %p139, %p140
      %p143 = scmp.ne.s32.totalorder %s128, %s142
      %p144 = scmp.eq.s32.totalorder %s20, 0
      %p145 = por %p143, %p144
      %s147 = sadd.s32 %s146, 1
      %p150 = scmp.eq.s32.totalorder %s14, 1
      %p151 = scmp.ne.s32.totalorder %s146, %s148
      %p152 = scmp.eq.s32.totalorder %s14, 0
      %p153 = por %p151, %p152
      %p154 = scmp.ne.s32.totalorder %s146, %s148
      %p155 = scmp.eq.s32.totalorder %s19, 1
      %p156 = por %p154, %p155
      %p157 = scmp.ne.s32.totalorder %s148, %s149
      %p158 = scmp.eq.s32.totalorder %s19, 0
      %p159 = por %p157, %p158
      %p160 = scmp.ne.s32.totalorder %s148, %s149
      %p161 = scmp.eq.s32.totalorder %s20, 1
      %p162 = por %p160, %p161
      %p164 = scmp.ne.s32.totalorder %s149, %s163
      %p165 = scmp.eq.s32.totalorder %s20, 0
      %p166 = por %p164, %p165
      %s167 = ssub.s32 %s21, %s40
      %s168 = ssub.s32 %s22, %s36
      %s169 = sor.u32 %s167, %s168
      %p170 = scmp.eq.s32.totalorder %s169, 0
      %s172 = sadd.s32 %s171, 1
      %s173 = scalar_select %p170, %s171, %s172
      %p176 = pneg %p170
      %p177 = scmp.eq.s32.totalorder %s14, 1
      %p178 = por %p176, %p177
      %p179 = scmp.ne.s32.totalorder %s171, %s174
      %p180 = scmp.eq.s32.totalorder %s14, 0
      %p181 = por %p179, %p180
      %p182 = scmp.ne.s32.totalorder %s171, %s174
      %p183 = scmp.eq.s32.totalorder %s19, 1
      %p184 = por %p182, %p183
      %p185 = scmp.ne.s32.totalorder %s174, %s175
      %p186 = scmp.eq.s32.totalorder %s19, 0
      %p187 = por %p185, %p186
      %p188 = scmp.ne.s32.totalorder %s174, %s175
      %p189 = scmp.eq.s32.totalorder %s20, 1
      %p190 = por %p188, %p189
      %p192 = scmp.ne.s32.totalorder %s175, %s191
      %p193 = scmp.eq.s32.totalorder %s20, 0
      %p194 = por %p192, %p193
      %p195 = scmp.le.s32.totalorder 1, %s14
      %p196 = scmp.lt.s32.totalorder %s14, 3
      %p197 = pnand %p195, %p196
      %p198 = pneg %p197
      // Predicated region
      $region9: #{attention_forward.3} parent=5 // pred_check
        _
      $region10: #{attention_forward.3} parent=5 // pred_check_branch
        %200 = sbr.rel (%p197) target = $region12
      $region11: #{attention_forward.3} parent=5 // pred_region
        %s201 = ssub.s32 %s14, 1
        // Predicated region
        $region13: #{attention_forward.3} parent=11 // pred_check
          %p202 = pneg %p138
        $region14: #{attention_forward.3} parent=11 // pred_check_branch
          %204 = sbr.rel (%p202) target = $region16
        $region15: #{attention_forward.3} parent=11 // pred_region
          _
        $region16: #{attention_forward.3} parent=11 // pred_fallthru
          _
        // Predicated region
        $region17: #{attention_forward.3} parent=11 // pred_check
          %p205 = pneg %p159
        $region18: #{attention_forward.3} parent=11 // pred_check_branch
          %207 = sbr.rel (%p205) target = $region20
        $region19: #{attention_forward.3} parent=11 // pred_region
          _
        $region20: #{attention_forward.3} parent=11 // pred_fallthru
          _
      $region12: #{attention_forward.3} parent=5 // pred_fallthru
        _
      %p208 = scmp.lt.s32.totalorder %s14, 2
      // Predicated region
      $region21: #{attention_forward.3} parent=5 // pred_check
        %p209 = pneg %p208
      $region22: #{attention_forward.3} parent=5 // pred_check_branch
        %211 = sbr.rel (%p209) target = $region24
      $region23: #{attention_forward.3} parent=5 // pred_region
        // Predicated region
        $region25: #{attention_forward.3} parent=23 // pred_check
          %p212 = pneg %p55
        $region26: #{attention_forward.3} parent=23 // pred_check_branch
          %214 = sbr.rel (%p212) target = $region28
        $region27: #{attention_forward.3} parent=23 // pred_region
          %p215 = scmp.lt.s32.totalorder %s21, 1
          %s216 = scalar_select %p215, %s21, 1
          %p217 = scmp.lt.s32.totalorder %s22, 0
          %s218 = scalar_select %p217, %s22, 0
          %s219 = smul.addr %s216, 4
          %s220 = sadd.s32 %s218, %s219
          %s221 = smul.addr %s220, 4
          %s222 = scalar_lea.vmem %s0, %s221
        $region28: #{attention_forward.3} parent=23 // pred_fallthru
          _
        // Predicated region
        $region29: #{attention_forward.3} parent=23 // pred_check
          %p223 = pneg %p83
        $region30: #{attention_forward.3} parent=23 // pred_check_branch
          %225 = sbr.rel (%p223) target = $region32
        $region31: #{attention_forward.3} parent=23 // pred_region
          %p226 = scmp.lt.s32.totalorder %s21, 1
          %s227 = scalar_select %p226, %s21, 1
          %p228 = scmp.lt.s32.totalorder %s23, 0
          %s229 = scalar_select %p228, %s23, 0
          %s230 = smul.addr %s227, 4
          %s231 = sadd.s32 %s229, %s230
          %s232 = smul.addr %s231, 4
          %s233 = scalar_lea.vmem %s1, %s232
        $region32: #{attention_forward.3} parent=23 // pred_fallthru
          _
        // Predicated region
        $region33: #{attention_forward.3} parent=23 // pred_check
          %p234 = pneg %p111
        $region34: #{attention_forward.3} parent=23 // pred_check_branch
          %236 = sbr.rel (%p234) target = $region36
        $region35: #{attention_forward.3} parent=23 // pred_region
          %p237 = scmp.lt.s32.totalorder %s21, 1
          %s238 = scalar_select %p237, %s21, 1
          %p239 = scmp.lt.s32.totalorder %s23, 0
          %s240 = scalar_select %p239, %s23, 0
          %s241 = smul.addr %s238, 4
          %s242 = sadd.s32 %s240, %s241
          %s243 = smul.addr %s242, 4
          %s244 = scalar_lea.vmem %s2, %s243
        $region36: #{attention_forward.3} parent=23 // pred_fallthru
          _
      $region24: #{attention_forward.3} parent=5 // pred_fallthru
        _
      %p245 = scmp.le.s32.totalorder 1, %s14
      %p246 = scmp.lt.s32.totalorder %s14, 3
      %p247 = pnand %p245, %p246
      %p248 = pneg %p247
      // Predicated region
      $region37: #{attention_forward.3} parent=5 // pred_check
        _
      $region38: #{attention_forward.3} parent=5 // pred_check_branch
        %250 = sbr.rel (%p247) target = $region40
      $region39: #{attention_forward.3} parent=5 // pred_region
        %s251 = ssub.s32 %s14, 1
        %p252 = scmp.lt.s32.totalorder %s24, 1
        %s253 = scalar_select %p252, %s24, 1
        %p254 = scmp.lt.s32.totalorder %s25, 0
        %s255 = scalar_select %p254, %s25, 0
        %s256 = smul.addr %s253, 4
        %s257 = sadd.s32 %s255, %s256
        %s258 = smul.addr %s257, 4
        %s259 = scalar_lea.vmem %s0, %s258
        %p260 = pneg %p61
        %p261 = pneg %p58
        %p262 = scmp.lt.s32.totalorder %s24, 1
        %s263 = scalar_select %p262, %s24, 1
        %p264 = scmp.lt.s32.totalorder %s26, 0
        %s265 = scalar_select %p264, %s26, 0
        %s266 = smul.addr %s263, 4
        %s267 = sadd.s32 %s265, %s266
        %s268 = smul.addr %s267, 4
        %s269 = scalar_lea.vmem %s1, %s268
        %p270 = pneg %p89
        %p271 = pneg %p86
        %p272 = scmp.lt.s32.totalorder %s24, 1
        %s273 = scalar_select %p272, %s24, 1
        %p274 = scmp.lt.s32.totalorder %s26, 0
        %s275 = scalar_select %p274, %s26, 0
        %s276 = smul.addr %s273, 4
        %s277 = sadd.s32 %s275, %s276
        %s278 = smul.addr %s277, 4
        %s279 = scalar_lea.vmem %s2, %s278
        %p280 = pneg %p117
        %p281 = pneg %p114
        %p282 = pneg %p138
        %p283 = pneg %p135
        %p284 = pneg %p159
        %p285 = pneg %p156
        %p286 = pneg %p187
        %p287 = pneg %p184
        %s288 = sand.u32 %s174, 1
        %s289 = scalar_lea.sflag [#allocation6], %s288
        %s290 = sand.u32 %s174, 1
        %s291 = smul.addr %s290, 8
        %s292 = scalar_lea.vmem [#allocation5], %s291
        %p293 = scmp.lt.s32.totalorder %s24, 1
        %s294 = scalar_select %p293, %s24, 1
        %p295 = scmp.lt.s32.totalorder %s25, 0
        %s296 = scalar_select %p295, %s25, 0
        %s297 = smul.addr %s294, 4
        %s298 = sadd.s32 %s296, %s297
        %s299 = smul.addr %s298, 4
        %s300 = scalar_lea.vmem %s0, %s299
        %p301 = scmp.lt.s32.totalorder %s24, 1
        %s302 = scalar_select %p301, %s24, 1
        %p303 = scmp.lt.s32.totalorder %s26, 0
        %s304 = scalar_select %p303, %s26, 0
        %s305 = smul.addr %s302, 4
        %s306 = sadd.s32 %s304, %s305
        %s307 = smul.addr %s306, 4
        %s308 = scalar_lea.vmem %s1, %s307
        %p309 = scmp.lt.s32.totalorder %s24, 1
        %s310 = scalar_select %p309, %s24, 1
        %p311 = scmp.lt.s32.totalorder %s26, 0
        %s312 = scalar_select %p311, %s26, 0
        %s313 = smul.addr %s310, 4
        %s314 = sadd.s32 %s312, %s313
        %s315 = smul.addr %s314, 4
        %s316 = scalar_lea.vmem %s2, %s315
        %p319 = scmp.eq.s32.totalorder %s26, 0
        // Predicated region
        $region41: #{attention_forward.3} parent=39 // pred_check
          %p320 = pneg %p319
        $region42: #{attention_forward.3} parent=39 // pred_check_branch
          %322 = sbr.rel (%p320) target = $region44
        $region43: #{attention_forward.3} parent=39 // pred_region
          %vm323 = vcmask 7168
          %324 = vst.msk [vmem:[#allocation2] sm:$0xff] %vm323, -inf
          %325 = vst.msk [vmem:[#allocation2 + $0x8] sm:$0xff] %vm323, -inf
          %326 = vst.msk [vmem:[#allocation2 + $0x10] sm:$0xff] %vm323, -inf
          %327 = vst.msk [vmem:[#allocation2 + $0x18] sm:$0xff] %vm323, -inf
          %328 = vst.msk [vmem:[#allocation3] sm:$0xff] %vm323, 0.0
          %329 = vst.msk [vmem:[#allocation3 + $0x8] sm:$0xff] %vm323, 0.0
          %330 = vst.msk [vmem:[#allocation3 + $0x10] sm:$0xff] %vm323, 0.0
          %331 = vst.msk [vmem:[#allocation3 + $0x18] sm:$0xff] %vm323, 0.0
          %vm332 = vcmask 64512
          %333 = vst.msk [vmem:[#allocation4] sm:$0xff] %vm332, 0.0
          %334 = vst.msk [vmem:[#allocation4 + $0x8] sm:$0xff] %vm332, 0.0
          %335 = vst.msk [vmem:[#allocation4 + $0x10] sm:$0xff] %vm332, 0.0
          %336 = vst.msk [vmem:[#allocation4 + $0x18] sm:$0xff] %vm332, 0.0
        $region44: #{attention_forward.3} parent=39 // pred_fallthru
          _
        %v337 = vld [vmem:[%s300] sm:$0xf]
        %v338 = vld [vmem:[%s300 + $0x4] sm:$0xf]
        %v339 = vld [vmem:[%s300 + $0x8] sm:$0xf]
        %v340 = vld [vmem:[%s300 + $0xc] sm:$0xf]
        %v341 = vmul.bf16 %v337, 1052065461
        %v342 = vmul.bf16 %v338, 1052065461
        %v343 = vmul.bf16 %v339, 1052065461
        %v344 = vmul.bf16 %v340, 1052065461
        %v345 = vld [vmem:[%s308] sm:$0xf]
        %v346 = vld [vmem:[%s308 + $0x4] sm:$0xf]
        %v347 = vld [vmem:[%s308 + $0x8] sm:$0xf]
        %v348 = vld [vmem:[%s308 + $0xc] sm:$0xf]
        %v349 = vld [vmem:[%s316] sm:$0xf]
        %v350 = vld [vmem:[%s316 + $0x4] sm:$0xf]
        %v351 = vld [vmem:[%s316 + $0x8] sm:$0xf]
        %v352 = vld [vmem:[%s316 + $0xc] sm:$0xf]
        %vm353 = vcmask 64512
        %v355 = vsel %vm353, %v341, 0
        %v358 = vsel %vm353, %v345, 0
        %360 = vmatprep.subr.bf16.mxu0 0
        %361 = vmatpush1.bf16.xpose.msra.mxu0 %v358
        %362 = vmatprep.subr.bf16.mxu0 0
        %363 = vmatpush1.bf16.xpose.msra.mxu0 0
        %364 = vmatprep.subr.bf16.mxu0 0
        %365 = vmatpush1.bf16.xpose.msra.mxu0 0
        %366 = vmatprep.subr.bf16.mxu0 0
        %367 = vmatpush1.bf16.xpose.msra.mxu0 0
        %368 = vmatprep.subr.bf16.mxu0 0
        %369 = vmatpush1.bf16.xpose.msra.mxu0 0
        %370 = vmatprep.subr.bf16.mxu0 0
        %371 = vmatpush1.bf16.xpose.msra.mxu0 0
        %372 = vmatprep.subr.bf16.mxu0 0
        %373 = vmatpush1.bf16.xpose.msra.mxu0 0
        %374 = vmatprep.subr.bf16.mxu0 0
        %375 = vmatpush1.bf16.xpose.msra.mxu0 0
        %376 = vmatprep.subr.bf16.mxu0 0
        %377 = vmatpush1.bf16.xpose.msra.mxu0 0
        %378 = vmatprep.subr.bf16.mxu0 0
        %379 = vmatpush1.bf16.xpose.msra.mxu0 0
        %380 = vmatprep.subr.bf16.mxu0 0
        %381 = vmatpush1.bf16.xpose.msra.mxu0 0
        %382 = vmatprep.subr.bf16.mxu0 0
        %383 = vmatpush1.bf16.xpose.msra.mxu0 0
        %384 = vmatprep.subr.bf16.mxu0 0
        %385 = vmatpush1.bf16.xpose.msra.mxu0 0
        %386 = vmatprep.subr.bf16.mxu0 0
        %387 = vmatpush1.bf16.xpose.msra.mxu0 0
        %388 = vmatprep.subr.bf16.mxu0 0
        %389 = vmatpush1.bf16.xpose.msra.mxu0 0
        %390 = vmatprep.subr.bf16.mxu0 0
        %391 = vmatpush1.bf16.xpose.msra.mxu0 0
        %392 = vmatprep.mubr.bf16.mxu0 0
        %393 = vmatmul.mubr.bf16.gmra.mrb[0].mxu0 %v355
        %v394 = vpop.f32.mrb[0].mxu0
        %v395 = vadd.f32 0.0, %v394
        %v396 = vpop.f32.mrb[0].mxu0
        %v397 = vpop.f32.mrb[0].mxu0
        %v398 = vpop.f32.mrb[0].mxu0
        %399 = vdwg.mxu0
        %v401 = vsel %vm353, %v342, 0
        %v404 = vsel %vm353, %v346, 0
        %406 = vmatprep.subr.bf16.mxu0 0
        %407 = vmatpush1.bf16.xpose.msra.mxu0 %v404
        %408 = vmatprep.subr.bf16.mxu0 0
        %409 = vmatpush1.bf16.xpose.msra.mxu0 0
        %410 = vmatprep.subr.bf16.mxu0 0
        %411 = vmatpush1.bf16.xpose.msra.mxu0 0
        %412 = vmatprep.subr.bf16.mxu0 0
        %413 = vmatpush1.bf16.xpose.msra.mxu0 0
        %414 = vmatprep.subr.bf16.mxu0 0
        %415 = vmatpush1.bf16.xpose.msra.mxu0 0
        %416 = vmatprep.subr.bf16.mxu0 0
        %417 = vmatpush1.bf16.xpose.msra.mxu0 0
        %418 = vmatprep.subr.bf16.mxu0 0
        %419 = vmatpush1.bf16.xpose.msra.mxu0 0
        %420 = vmatprep.subr.bf16.mxu0 0
        %421 = vmatpush1.bf16.xpose.msra.mxu0 0
        %422 = vmatprep.subr.bf16.mxu0 0
        %423 = vmatpush1.bf16.xpose.msra.mxu0 0
        %424 = vmatprep.subr.bf16.mxu0 0
        %425 = vmatpush1.bf16.xpose.msra.mxu0 0
        %426 = vmatprep.subr.bf16.mxu0 0
        %427 = vmatpush1.bf16.xpose.msra.mxu0 0
        %428 = vmatprep.subr.bf16.mxu0 0
        %429 = vmatpush1.bf16.xpose.msra.mxu0 0
        %430 = vmatprep.subr.bf16.mxu0 0
        %431 = vmatpush1.bf16.xpose.msra.mxu0 0
        %432 = vmatprep.subr.bf16.mxu0 0
        %433 = vmatpush1.bf16.xpose.msra.mxu0 0
        %434 = vmatprep.subr.bf16.mxu0 0
        %435 = vmatpush1.bf16.xpose.msra.mxu0 0
        %436 = vmatprep.subr.bf16.mxu0 0
        %437 = vmatpush1.bf16.xpose.msra.mxu0 0
        %438 = vmatprep.mubr.bf16.mxu0 0
        %439 = vmatmul.mubr.bf16.gmra.mrb[0].mxu0 %v401
        %v440 = vpop.f32.mrb[0].mxu0
        %v441 = vadd.f32 0.0, %v440
        %v442 = vpop.f32.mrb[0].mxu0
        %v443 = vpop.f32.mrb[0].mxu0
        %v444 = vpop.f32.mrb[0].mxu0
        %445 = vdwg.mxu0
        %v447 = vsel %vm353, %v343, 0
        %v450 = vsel %vm353, %v347, 0
        %452 = vmatprep.subr.bf16.mxu0 0
        %453 = vmatpush1.bf16.xpose.msra.mxu0 %v450
        %454 = vmatprep.subr.bf16.mxu0 0
        %455 = vmatpush1.bf16.xpose.msra.mxu0 0
        %456 = vmatprep.subr.bf16.mxu0 0
        %457 = vmatpush1.bf16.xpose.msra.mxu0 0
        %458 = vmatprep.subr.bf16.mxu0 0
        %459 = vmatpush1.bf16.xpose.msra.mxu0 0
        %460 = vmatprep.subr.bf16.mxu0 0
        %461 = vmatpush1.bf16.xpose.msra.mxu0 0
        %462 = vmatprep.subr.bf16.mxu0 0
        %463 = vmatpush1.bf16.xpose.msra.mxu0 0
        %464 = vmatprep.subr.bf16.mxu0 0
        %465 = vmatpush1.bf16.xpose.msra.mxu0 0
        %466 = vmatprep.subr.bf16.mxu0 0
        %467 = vmatpush1.bf16.xpose.msra.mxu0 0
        %468 = vmatprep.subr.bf16.mxu0 0
        %469 = vmatpush1.bf16.xpose.msra.mxu0 0
        %470 = vmatprep.subr.bf16.mxu0 0
        %471 = vmatpush1.bf16.xpose.msra.mxu0 0
        %472 = vmatprep.subr.bf16.mxu0 0
        %473 = vmatpush1.bf16.xpose.msra.mxu0 0
        %474 = vmatprep.subr.bf16.mxu0 0
        %475 = vmatpush1.bf16.xpose.msra.mxu0 0
        %476 = vmatprep.subr.bf16.mxu0 0
        %477 = vmatpush1.bf16.xpose.msra.mxu0 0
        %478 = vmatprep.subr.bf16.mxu0 0
        %479 = vmatpush1.bf16.xpose.msra.mxu0 0
        %480 = vmatprep.subr.bf16.mxu0 0
        %481 = vmatpush1.bf16.xpose.msra.mxu0 0
        %482 = vmatprep.subr.bf16.mxu0 0
        %483 = vmatpush1.bf16.xpose.msra.mxu0 0
        %484 = vmatprep.mubr.bf16.mxu0 0
        %485 = vmatmul.mubr.bf16.gmra.mrb[0].mxu0 %v447
        %v486 = vpop.f32.mrb[0].mxu0
        %v487 = vadd.f32 0.0, %v486
        %v488 = vpop.f32.mrb[0].mxu0
        %v489 = vpop.f32.mrb[0].mxu0
        %v490 = vpop.f32.mrb[0].mxu0
        %491 = vdwg.mxu0
        %v493 = vsel %vm353, %v344, 0
        %v496 = vsel %vm353, %v348, 0
        %498 = vmatprep.subr.bf16.mxu0 0
        %499 = vmatpush1.bf16.xpose.msra.mxu0 %v496
        %500 = vmatprep.subr.bf16.mxu0 0
        %501 = vmatpush1.bf16.xpose.msra.mxu0 0
        %502 = vmatprep.subr.bf16.mxu0 0
        %503 = vmatpush1.bf16.xpose.msra.mxu0 0
        %504 = vmatprep.subr.bf16.mxu0 0
        %505 = vmatpush1.bf16.xpose.msra.mxu0 0
        %506 = vmatprep.subr.bf16.mxu0 0
        %507 = vmatpush1.bf16.xpose.msra.mxu0 0
        %508 = vmatprep.subr.bf16.mxu0 0
        %509 = vmatpush1.bf16.xpose.msra.mxu0 0
        %510 = vmatprep.subr.bf16.mxu0 0
        %511 = vmatpush1.bf16.xpose.msra.mxu0 0
        %512 = vmatprep.subr.bf16.mxu0 0
        %513 = vmatpush1.bf16.xpose.msra.mxu0 0
        %514 = vmatprep.subr.bf16.mxu0 0
        %515 = vmatpush1.bf16.xpose.msra.mxu0 0
        %516 = vmatprep.subr.bf16.mxu0 0
        %517 = vmatpush1.bf16.xpose.msra.mxu0 0
        %518 = vmatprep.subr.bf16.mxu0 0
        %519 = vmatpush1.bf16.xpose.msra.mxu0 0
        %520 = vmatprep.subr.bf16.mxu0 0
        %521 = vmatpush1.bf16.xpose.msra.mxu0 0
        %522 = vmatprep.subr.bf16.mxu0 0
        %523 = vmatpush1.bf16.xpose.msra.mxu0 0
        %524 = vmatprep.subr.bf16.mxu0 0
        %525 = vmatpush1.bf16.xpose.msra.mxu0 0
        %526 = vmatprep.subr.bf16.mxu0 0
        %527 = vmatpush1.bf16.xpose.msra.mxu0 0
        %528 = vmatprep.subr.bf16.mxu0 0
        %529 = vmatpush1.bf16.xpose.msra.mxu0 0
        %530 = vmatprep.mubr.bf16.mxu0 0
        %531 = vmatmul.mubr.bf16.gmra.mrb[0].mxu0 %v493
        %v532 = vpop.f32.mrb[0].mxu0
        %v533 = vadd.f32 0.0, %v532
        %v534 = vpop.f32.mrb[0].mxu0
        %v535 = vpop.f32.mrb[0].mxu0
        %v536 = vpop.f32.mrb[0].mxu0
        %537 = vdwg.mxu0
        %v538 = vld [vmem:[#allocation2] sm:$0xff]
        %v539 = vld [vmem:[#allocation2 + $0x8] sm:$0xff]
        %v540 = vld [vmem:[#allocation2 + $0x10] sm:$0xff]
        %v541 = vld [vmem:[#allocation2 + $0x18] sm:$0xff]
        %v542 = vsel %vm353, %v395, -inf
        %543 = vmax.xlane.f32.xlu0 %v542
        %v544 = vpop.xlane.xlu0 %543
        %v545 = vsel %vm353, %v441, -inf
        %546 = vmax.xlane.f32.xlu0 %v545
        %v547 = vpop.xlane.xlu0 %546
        %v548 = vsel %vm353, %v487, -inf
        %549 = vmax.xlane.f32.xlu0 %v548
        %v550 = vpop.xlane.xlu0 %549
        %v551 = vsel %vm353, %v533, -inf
        %552 = vmax.xlane.f32.xlu0 %v551
        %v553 = vpop.xlane.xlu0 %552
        %v554 = vmax.f32 %v538, %v544
        %v555 = vmax.f32 %v539, %v547
        %v556 = vmax.f32 %v540, %v550
        %v557 = vmax.f32 %v541, %v553
        %v558 = vsub.f32 %v538, %v554
        %v559 = vsub.f32 %v539, %v555
        %v560 = vsub.f32 %v540, %v556
        %v561 = vsub.f32 %v541, %v557
        %v562 = vmul.f32 %v558, 1.442695
        %v563 = vpow.pop %v562
        %v564 = vmul.f32 %v559, 1.442695
        %v565 = vpow.pop %v564
        %v566 = vmul.f32 %v560, 1.442695
        %v567 = vpow.pop %v566
        %v568 = vmul.f32 %v561, 1.442695
        %v569 = vpow.pop %v568
        %571 = vset.pattern.permute.xlu0 0
        %572 = vperm.xlu0 %571, %v554
        %v573 = vpop.permute.xlu0 %572
        %576 = vset.pattern.permute.xlu0 0
        %577 = vperm.xlu0 %576, %v555
        %v578 = vpop.permute.xlu0 %577
        %581 = vset.pattern.permute.xlu0 0
        %582 = vperm.xlu0 %581, %v556
        %v583 = vpop.permute.xlu0 %582
        %586 = vset.pattern.permute.xlu0 0
        %587 = vperm.xlu0 %586, %v557
        %v588 = vpop.permute.xlu0 %587
        %v590 = vsub.f32 %v395, %v573
        %v591 = vsub.f32 %v441, %v578
        %v592 = vsub.f32 %v487, %v583
        %v593 = vsub.f32 %v533, %v588
        %v594 = vmul.f32 %v590, 1.442695
        %v595 = vpow.pop %v594
        %v596 = vmul.f32 %v591, 1.442695
        %v597 = vpow.pop %v596
        %v598 = vmul.f32 %v592, 1.442695
        %v599 = vpow.pop %v598
        %v600 = vmul.f32 %v593, 1.442695
        %v601 = vpow.pop %v600
        %v602 = vld [vmem:[#allocation3] sm:$0xff]
        %v603 = vld [vmem:[#allocation3 + $0x8] sm:$0xff]
        %v604 = vld [vmem:[#allocation3 + $0x10] sm:$0xff]
        %v605 = vld [vmem:[#allocation3 + $0x18] sm:$0xff]
        %v606 = vmul.f32 %v563, %v602
        %v607 = vmul.f32 %v565, %v603
        %v608 = vmul.f32 %v567, %v604
        %v609 = vmul.f32 %v569, %v605
        %v610 = vsel %vm353, %v595, 0.0
        %611 = vadd.xlane.f32.xlu0 %v610
        %v612 = vpop.xlane.xlu0 %611
        %v613 = vsel %vm353, %v597, 0.0
        %614 = vadd.xlane.f32.xlu0 %v613
        %v615 = vpop.xlane.xlu0 %614
        %v616 = vsel %vm353, %v599, 0.0
        %617 = vadd.xlane.f32.xlu0 %v616
        %v618 = vpop.xlane.xlu0 %617
        %v619 = vsel %vm353, %v601, 0.0
        %620 = vadd.xlane.f32.xlu0 %v619
        %v621 = vpop.xlane.xlu0 %620
        %v622 = vadd.f32 %v606, %v612
        %v623 = vadd.f32 %v607, %v615
        %v624 = vadd.f32 %v608, %v618
        %v625 = vadd.f32 %v609, %v621
        %vm626 = vcmask 7168
        %627 = vst.msk [vmem:[#allocation3] sm:$0xff] %vm626, %v622
        %628 = vst.msk [vmem:[#allocation3 + $0x8] sm:$0xff] %vm626, %v623
        %629 = vst.msk [vmem:[#allocation3 + $0x10] sm:$0xff] %vm626, %v624
        %630 = vst.msk [vmem:[#allocation3 + $0x18] sm:$0xff] %vm626, %v625
        %v631 = vld [vmem:[#allocation4] sm:$0xff]
        %v632 = vld [vmem:[#allocation4 + $0x8] sm:$0xff]
        %v633 = vld [vmem:[#allocation4 + $0x10] sm:$0xff]
        %v634 = vld [vmem:[#allocation4 + $0x18] sm:$0xff]
        %636 = vset.pattern.permute.xlu0 0
        %637 = vperm.xlu0 %636, %v563
        %v638 = vpop.permute.xlu0 %637
        %641 = vset.pattern.permute.xlu0 0
        %642 = vperm.xlu0 %641, %v565
        %v643 = vpop.permute.xlu0 %642
        %646 = vset.pattern.permute.xlu0 0
        %647 = vperm.xlu0 %646, %v567
        %v648 = vpop.permute.xlu0 %647
        %651 = vset.pattern.permute.xlu0 0
        %652 = vperm.xlu0 %651, %v569
        %v653 = vpop.permute.xlu0 %652
        %v655 = vmul.f32 %v638, %v631
        %v656 = vmul.f32 %v643, %v632
        %v657 = vmul.f32 %v648, %v633
        %v658 = vmul.f32 %v653, %v634
        %v659 = vpack.c.bf16 %v595, %v595
        %v660 = vpack.c.bf16 %v597, %v597
        %v661 = vpack.c.bf16 %v599, %v599
        %v662 = vpack.c.bf16 %v601, %v601
        %v664 = vsel %vm353, %v659, 0
        %vm666 = vcmask 1043456
        %v668 = vsel %vm666, %v349, 0
        %670 = vmatprep.subr.bf16.mxu0 0
        %671 = vmatpush1.bf16.msra.mxu0 %v668
        %672 = vmatprep.subr.bf16.mxu0 0
        %673 = vmatpush1.bf16.msra.mxu0 0
        %674 = vmatprep.subr.bf16.mxu0 0
        %675 = vmatpush1.bf16.msra.mxu0 0
        %676 = vmatprep.subr.bf16.mxu0 0
        %677 = vmatpush1.bf16.msra.mxu0 0
        %678 = vmatprep.subr.bf16.mxu0 0
        %679 = vmatpush1.bf16.msra.mxu0 0
        %680 = vmatprep.subr.bf16.mxu0 0
        %681 = vmatpush1.bf16.msra.mxu0 0
        %682 = vmatprep.subr.bf16.mxu0 0
        %683 = vmatpush1.bf16.msra.mxu0 0
        %684 = vmatprep.subr.bf16.mxu0 0
        %685 = vmatpush1.bf16.msra.mxu0 0
        %686 = vmatprep.subr.bf16.mxu0 0
        %687 = vmatpush1.bf16.msra.mxu0 0
        %688 = vmatprep.subr.bf16.mxu0 0
        %689 = vmatpush1.bf16.msra.mxu0 0
        %690 = vmatprep.subr.bf16.mxu0 0
        %691 = vmatpush1.bf16.msra.mxu0 0
        %692 = vmatprep.subr.bf16.mxu0 0
        %693 = vmatpush1.bf16.msra.mxu0 0
        %694 = vmatprep.subr.bf16.mxu0 0
        %695 = vmatpush1.bf16.msra.mxu0 0
        %696 = vmatprep.subr.bf16.mxu0 0
        %697 = vmatpush1.bf16.msra.mxu0 0
        %698 = vmatprep.subr.bf16.mxu0 0
        %699 = vmatpush1.bf16.msra.mxu0 0
        %700 = vmatprep.subr.bf16.mxu0 0
        %701 = vmatpush1.bf16.msra.mxu0 0
        %702 = vmatprep.mubr.bf16.mxu0 0
        %703 = vmatmul.mubr.bf16.gmra.mrb[0].mxu0 %v664
        %v704 = vpop.f32.mrb[0].mxu0
        %v705 = vadd.f32 0.0, %v704
        %v706 = vpop.f32.mrb[0].mxu0
        %v707 = vpop.f32.mrb[0].mxu0
        %v708 = vpop.f32.mrb[0].mxu0
        %709 = vdwg.mxu0
        %v711 = vsel %vm353, %v660, 0
        %v714 = vsel %vm666, %v350, 0
        %716 = vmatprep.subr.bf16.mxu0 0
        %717 = vmatpush1.bf16.msra.mxu0 %v714
        %718 = vmatprep.subr.bf16.mxu0 0
        %719 = vmatpush1.bf16.msra.mxu0 0
        %720 = vmatprep.subr.bf16.mxu0 0
        %721 = vmatpush1.bf16.msra.mxu0 0
        %722 = vmatprep.subr.bf16.mxu0 0
        %723 = vmatpush1.bf16.msra.mxu0 0
        %724 = vmatprep.subr.bf16.mxu0 0
        %725 = vmatpush1.bf16.msra.mxu0 0
        %726 = vmatprep.subr.bf16.mxu0 0
        %727 = vmatpush1.bf16.msra.mxu0 0
        %728 = vmatprep.subr.bf16.mxu0 0
        %729 = vmatpush1.bf16.msra.mxu0 0
        %730 = vmatprep.subr.bf16.mxu0 0
        %731 = vmatpush1.bf16.msra.mxu0 0
        %732 = vmatprep.subr.bf16.mxu0 0
        %733 = vmatpush1.bf16.msra.mxu0 0
        %734 = vmatprep.subr.bf16.mxu0 0
        %735 = vmatpush1.bf16.msra.mxu0 0
        %736 = vmatprep.subr.bf16.mxu0 0
        %737 = vmatpush1.bf16.msra.mxu0 0
        %738 = vmatprep.subr.bf16.mxu0 0
        %739 = vmatpush1.bf16.msra.mxu0 0
        %740 = vmatprep.subr.bf16.mxu0 0
        %741 = vmatpush1.bf16.msra.mxu0 0
        %742 = vmatprep.subr.bf16.mxu0 0
        %743 = vmatpush1.bf16.msra.mxu0 0
        %744 = vmatprep.subr.bf16.mxu0 0
        %745 = vmatpush1.bf16.msra.mxu0 0
        %746 = vmatprep.subr.bf16.mxu0 0
        %747 = vmatpush1.bf16.msra.mxu0 0
        %748 = vmatprep.mubr.bf16.mxu0 0
        %749 = vmatmul.mubr.bf16.gmra.mrb[0].mxu0 %v711
        %v750 = vpop.f32.mrb[0].mxu0
        %v751 = vadd.f32 0.0, %v750
        %v752 = vpop.f32.mrb[0].mxu0
        %v753 = vpop.f32.mrb[0].mxu0
        %v754 = vpop.f32.mrb[0].mxu0
        %755 = vdwg.mxu0
        %v757 = vsel %vm353, %v661, 0
        %v760 = vsel %vm666, %v351, 0
        %762 = vmatprep.subr.bf16.mxu0 0
        %763 = vmatpush1.bf16.msra.mxu0 %v760
        %764 = vmatprep.subr.bf16.mxu0 0
        %765 = vmatpush1.bf16.msra.mxu0 0
        %766 = vmatprep.subr.bf16.mxu0 0
        %767 = vmatpush1.bf16.msra.mxu0 0
        %768 = vmatprep.subr.bf16.mxu0 0
        %769 = vmatpush1.bf16.msra.mxu0 0
        %770 = vmatprep.subr.bf16.mxu0 0
        %771 = vmatpush1.bf16.msra.mxu0 0
        %772 = vmatprep.subr.bf16.mxu0 0
        %773 = vmatpush1.bf16.msra.mxu0 0
        %774 = vmatprep.subr.bf16.mxu0 0
        %775 = vmatpush1.bf16.msra.mxu0 0
        %776 = vmatprep.subr.bf16.mxu0 0
        %777 = vmatpush1.bf16.msra.mxu0 0
        %778 = vmatprep.subr.bf16.mxu0 0
        %779 = vmatpush1.bf16.msra.mxu0 0
        %780 = vmatprep.subr.bf16.mxu0 0
        %781 = vmatpush1.bf16.msra.mxu0 0
        %782 = vmatprep.subr.bf16.mxu0 0
        %783 = vmatpush1.bf16.msra.mxu0 0
        %784 = vmatprep.subr.bf16.mxu0 0
        %785 = vmatpush1.bf16.msra.mxu0 0
        %786 = vmatprep.subr.bf16.mxu0 0
        %787 = vmatpush1.bf16.msra.mxu0 0
        %788 = vmatprep.subr.bf16.mxu0 0
        %789 = vmatpush1.bf16.msra.mxu0 0
        %790 = vmatprep.subr.bf16.mxu0 0
        %791 = vmatpush1.bf16.msra.mxu0 0
        %792 = vmatprep.subr.bf16.mxu0 0
        %793 = vmatpush1.bf16.msra.mxu0 0
        %794 = vmatprep.mubr.bf16.mxu0 0
        %795 = vmatmul.mubr.bf16.gmra.mrb[0].mxu0 %v757
        %v796 = vpop.f32.mrb[0].mxu0
        %v797 = vadd.f32 0.0, %v796
        %v798 = vpop.f32.mrb[0].mxu0
        %v799 = vpop.f32.mrb[0].mxu0
        %v800 = vpop.f32.mrb[0].mxu0
        %801 = vdwg.mxu0
        %v803 = vsel %vm353, %v662, 0
        %v806 = vsel %vm666, %v352, 0
        %808 = vmatprep.subr.bf16.mxu0 0
        %809 = vmatpush1.bf16.msra.mxu0 %v806
        %810 = vmatprep.subr.bf16.mxu0 0
        %811 = vmatpush1.bf16.msra.mxu0 0
        %812 = vmatprep.subr.bf16.mxu0 0
        %813 = vmatpush1.bf16.msra.mxu0 0
        %814 = vmatprep.subr.bf16.mxu0 0
        %815 = vmatpush1.bf16.msra.mxu0 0
        %816 = vmatprep.subr.bf16.mxu0 0
        %817 = vmatpush1.bf16.msra.mxu0 0
        %818 = vmatprep.subr.bf16.mxu0 0
        %819 = vmatpush1.bf16.msra.mxu0 0
        %820 = vmatprep.subr.bf16.mxu0 0
        %821 = vmatpush1.bf16.msra.mxu0 0
        %822 = vmatprep.subr.bf16.mxu0 0
        %823 = vmatpush1.bf16.msra.mxu0 0
        %824 = vmatprep.subr.bf16.mxu0 0
        %825 = vmatpush1.bf16.msra.mxu0 0
        %826 = vmatprep.subr.bf16.mxu0 0
        %827 = vmatpush1.bf16.msra.mxu0 0
        %828 = vmatprep.subr.bf16.mxu0 0
        %829 = vmatpush1.bf16.msra.mxu0 0
        %830 = vmatprep.subr.bf16.mxu0 0
        %831 = vmatpush1.bf16.msra.mxu0 0
        %832 = vmatprep.subr.bf16.mxu0 0
        %833 = vmatpush1.bf16.msra.mxu0 0
        %834 = vmatprep.subr.bf16.mxu0 0
        %835 = vmatpush1.bf16.msra.mxu0 0
        %836 = vmatprep.subr.bf16.mxu0 0
        %837 = vmatpush1.bf16.msra.mxu0 0
        %838 = vmatprep.subr.bf16.mxu0 0
        %839 = vmatpush1.bf16.msra.mxu0 0
        %840 = vmatprep.mubr.bf16.mxu0 0
        %841 = vmatmul.mubr.bf16.gmra.mrb[0].mxu0 %v803
        %v842 = vpop.f32.mrb[0].mxu0
        %v843 = vadd.f32 0.0, %v842
        %v844 = vpop.f32.mrb[0].mxu0
        %v845 = vpop.f32.mrb[0].mxu0
        %v846 = vpop.f32.mrb[0].mxu0
        %847 = vdwg.mxu0
        %v848 = vadd.f32 %v655, %v705
        %v849 = vadd.f32 %v656, %v751
        %v850 = vadd.f32 %v657, %v797
        %v851 = vadd.f32 %v658, %v843
        %852 = vst.msk [vmem:[#allocation4] sm:$0xff] %vm353, %v848
        %853 = vst.msk [vmem:[#allocation4 + $0x8] sm:$0xff] %vm353, %v849
        %854 = vst.msk [vmem:[#allocation4 + $0x10] sm:$0xff] %vm353, %v850
        %855 = vst.msk [vmem:[#allocation4 + $0x18] sm:$0xff] %vm353, %v851
        %856 = vst.msk [vmem:[#allocation2] sm:$0xff] %vm626, %v554
        %857 = vst.msk [vmem:[#allocation2 + $0x8] sm:$0xff] %vm626, %v555
        %858 = vst.msk [vmem:[#allocation2 + $0x10] sm:$0xff] %vm626, %v556
        %859 = vst.msk [vmem:[#allocation2 + $0x18] sm:$0xff] %vm626, %v557
        // Predicated region
        $region45: #{attention_forward.3} parent=39 // pred_check
          %p860 = pneg %p319
        $region46: #{attention_forward.3} parent=39 // pred_check_branch
          %862 = sbr.rel (%p860) target = $region48
        $region47: #{attention_forward.3} parent=39 // pred_region
          %v863 = vld [vmem:[#allocation4] sm:$0xff]
          %v864 = vld [vmem:[#allocation4 + $0x8] sm:$0xff]
          %v865 = vld [vmem:[#allocation4 + $0x10] sm:$0xff]
          %v866 = vld [vmem:[#allocation4 + $0x18] sm:$0xff]
          %v867 = vld [vmem:[#allocation3] sm:$0xff]
          %v868 = vld [vmem:[#allocation3 + $0x8] sm:$0xff]
          %v869 = vld [vmem:[#allocation3 + $0x10] sm:$0xff]
          %v870 = vld [vmem:[#allocation3 + $0x18] sm:$0xff]
          %v871 = vrcp.pop %v867
          %v872 = vrcp.pop %v868
          %v873 = vrcp.pop %v869
          %v874 = vrcp.pop %v870
          %876 = vset.pattern.permute.xlu0 0
          %877 = vperm.xlu0 %876, %v871
          %v878 = vpop.permute.xlu0 %877
          %881 = vset.pattern.permute.xlu0 0
          %882 = vperm.xlu0 %881, %v872
          %v883 = vpop.permute.xlu0 %882
          %886 = vset.pattern.permute.xlu0 0
          %887 = vperm.xlu0 %886, %v873
          %v888 = vpop.permute.xlu0 %887
          %891 = vset.pattern.permute.xlu0 0
          %892 = vperm.xlu0 %891, %v874
          %v893 = vpop.permute.xlu0 %892
          %v895 = vmul.f32 %v863, %v878
          %v896 = vmul.f32 %v864, %v883
          %v897 = vmul.f32 %v865, %v888
          %v898 = vmul.f32 %v866, %v893
          %v899 = vpack.c.bf16 %v895, %v895
          %v900 = vpack.c.bf16 %v896, %v896
          %v901 = vpack.c.bf16 %v897, %v897
          %v902 = vpack.c.bf16 %v898, %v898
          %v903 = vld [vmem:[%s3] sm:$0xf]
          %v904 = vld [vmem:[%s3 + $0x4] sm:$0xf]
          %v905 = vld [vmem:[%s3 + $0x8] sm:$0xf]
          %v906 = vld [vmem:[%s3 + $0xc] sm:$0xf]
          %v908 = vsel %vm353, %v899, 0
          %v911 = vsel %vm666, %v903, 0
          %913 = vmatprep.subr.bf16.mxu0 0
          %914 = vmatpush1.bf16.msra.mxu0 %v911
          %915 = vmatprep.subr.bf16.mxu0 0
          %916 = vmatpush1.bf16.msra.mxu0 0
          %917 = vmatprep.subr.bf16.mxu0 0
          %918 = vmatpush1.bf16.msra.mxu0 0
          %919 = vmatprep.subr.bf16.mxu0 0
          %920 = vmatpush1.bf16.msra.mxu0 0
          %921 = vmatprep.subr.bf16.mxu0 0
          %922 = vmatpush1.bf16.msra.mxu0 0
          %923 = vmatprep.subr.bf16.mxu0 0
          %924 = vmatpush1.bf16.msra.mxu0 0
          %925 = vmatprep.subr.bf16.mxu0 0
          %926 = vmatpush1.bf16.msra.mxu0 0
          %927 = vmatprep.subr.bf16.mxu0 0
          %928 = vmatpush1.bf16.msra.mxu0 0
          %929 = vmatprep.subr.bf16.mxu0 0
          %930 = vmatpush1.bf16.msra.mxu0 0
          %931 = vmatprep.subr.bf16.mxu0 0
          %932 = vmatpush1.bf16.msra.mxu0 0
          %933 = vmatprep.subr.bf16.mxu0 0
          %934 = vmatpush1.bf16.msra.mxu0 0
          %935 = vmatprep.subr.bf16.mxu0 0
          %936 = vmatpush1.bf16.msra.mxu0 0
          %937 = vmatprep.subr.bf16.mxu0 0
          %938 = vmatpush1.bf16.msra.mxu0 0
          %939 = vmatprep.subr.bf16.mxu0 0
          %940 = vmatpush1.bf16.msra.mxu0 0
          %941 = vmatprep.subr.bf16.mxu0 0
          %942 = vmatpush1.bf16.msra.mxu0 0
          %943 = vmatprep.subr.bf16.mxu0 0
          %944 = vmatpush1.bf16.msra.mxu0 0
          %945 = vmatprep.mubr.bf16.mxu0 0
          %946 = vmatmul.mubr.bf16.gmra.mrb[0].mxu0 %v908
          %v947 = vpop.f32.mrb[0].mxu0
          %v948 = vadd.f32 0.0, %v947
          %v949 = vpop.f32.mrb[0].mxu0
          %v950 = vpop.f32.mrb[0].mxu0
          %v951 = vpop.f32.mrb[0].mxu0
          %952 = vdwg.mxu0
          %v954 = vsel %vm353, %v900, 0
          %v957 = vsel %vm666, %v904, 0
          %959 = vmatprep.subr.bf16.mxu0 0
          %960 = vmatpush1.bf16.msra.mxu0 %v957
          %961 = vmatprep.subr.bf16.mxu0 0
          %962 = vmatpush1.bf16.msra.mxu0 0
          %963 = vmatprep.subr.bf16.mxu0 0
          %964 = vmatpush1.bf16.msra.mxu0 0
          %965 = vmatprep.subr.bf16.mxu0 0
          %966 = vmatpush1.bf16.msra.mxu0 0
          %967 = vmatprep.subr.bf16.mxu0 0
          %968 = vmatpush1.bf16.msra.mxu0 0
          %969 = vmatprep.subr.bf16.mxu0 0
          %970 = vmatpush1.bf16.msra.mxu0 0
          %971 = vmatprep.subr.bf16.mxu0 0
          %972 = vmatpush1.bf16.msra.mxu0 0
          %973 = vmatprep.subr.bf16.mxu0 0
          %974 = vmatpush1.bf16.msra.mxu0 0
          %975 = vmatprep.subr.bf16.mxu0 0
          %976 = vmatpush1.bf16.msra.mxu0 0
          %977 = vmatprep.subr.bf16.mxu0 0
          %978 = vmatpush1.bf16.msra.mxu0 0
          %979 = vmatprep.subr.bf16.mxu0 0
          %980 = vmatpush1.bf16.msra.mxu0 0
          %981 = vmatprep.subr.bf16.mxu0 0
          %982 = vmatpush1.bf16.msra.mxu0 0
          %983 = vmatprep.subr.bf16.mxu0 0
          %984 = vmatpush1.bf16.msra.mxu0 0
          %985 = vmatprep.subr.bf16.mxu0 0
          %986 = vmatpush1.bf16.msra.mxu0 0
          %987 = vmatprep.subr.bf16.mxu0 0
          %988 = vmatpush1.bf16.msra.mxu0 0
          %989 = vmatprep.subr.bf16.mxu0 0
          %990 = vmatpush1.bf16.msra.mxu0 0
          %991 = vmatprep.mubr.bf16.mxu0 0
          %992 = vmatmul.mubr.bf16.gmra.mrb[0].mxu0 %v954
          %v993 = vpop.f32.mrb[0].mxu0
          %v994 = vadd.f32 0.0, %v993
          %v995 = vpop.f32.mrb[0].mxu0
          %v996 = vpop.f32.mrb[0].mxu0
          %v997 = vpop.f32.mrb[0].mxu0
          %998 = vdwg.mxu0
          %v1000 = vsel %vm353, %v901, 0
          %v1003 = vsel %vm666, %v905, 0
          %1005 = vmatprep.subr.bf16.mxu0 0
          %1006 = vmatpush1.bf16.msra.mxu0 %v1003
          %1007 = vmatprep.subr.bf16.mxu0 0
          %1008 = vmatpush1.bf16.msra.mxu0 0
          %1009 = vmatprep.subr.bf16.mxu0 0
          %1010 = vmatpush1.bf16.msra.mxu0 0
          %1011 = vmatprep.subr.bf16.mxu0 0
          %1012 = vmatpush1.bf16.msra.mxu0 0
          %1013 = vmatprep.subr.bf16.mxu0 0
          %1014 = vmatpush1.bf16.msra.mxu0 0
          %1015 = vmatprep.subr.bf16.mxu0 0
          %1016 = vmatpush1.bf16.msra.mxu0 0
          %1017 = vmatprep.subr.bf16.mxu0 0
          %1018 = vmatpush1.bf16.msra.mxu0 0
          %1019 = vmatprep.subr.bf16.mxu0 0
          %1020 = vmatpush1.bf16.msra.mxu0 0
          %1021 = vmatprep.subr.bf16.mxu0 0
          %1022 = vmatpush1.bf16.msra.mxu0 0
          %1023 = vmatprep.subr.bf16.mxu0 0
          %1024 = vmatpush1.bf16.msra.mxu0 0
          %1025 = vmatprep.subr.bf16.mxu0 0
          %1026 = vmatpush1.bf16.msra.mxu0 0
          %1027 = vmatprep.subr.bf16.mxu0 0
          %1028 = vmatpush1.bf16.msra.mxu0 0
          %1029 = vmatprep.subr.bf16.mxu0 0
          %1030 = vmatpush1.bf16.msra.mxu0 0
          %1031 = vmatprep.subr.bf16.mxu0 0
          %1032 = vmatpush1.bf16.msra.mxu0 0
          %1033 = vmatprep.subr.bf16.mxu0 0
          %1034 = vmatpush1.bf16.msra.mxu0 0
          %1035 = vmatprep.subr.bf16.mxu0 0
          %1036 = vmatpush1.bf16.msra.mxu0 0
          %1037 = vmatprep.mubr.bf16.mxu0 0
          %1038 = vmatmul.mubr.bf16.gmra.mrb[0].mxu0 %v1000
          %v1039 = vpop.f32.mrb[0].mxu0
          %v1040 = vadd.f32 0.0, %v1039
          %v1041 = vpop.f32.mrb[0].mxu0
          %v1042 = vpop.f32.mrb[0].mxu0
          %v1043 = vpop.f32.mrb[0].mxu0
          %1044 = vdwg.mxu0
          %v1046 = vsel %vm353, %v902, 0
          %v1049 = vsel %vm666, %v906, 0
          %1051 = vmatprep.subr.bf16.mxu0 0
          %1052 = vmatpush1.bf16.msra.mxu0 %v1049
          %1053 = vmatprep.subr.bf16.mxu0 0
          %1054 = vmatpush1.bf16.msra.mxu0 0
          %1055 = vmatprep.subr.bf16.mxu0 0
          %1056 = vmatpush1.bf16.msra.mxu0 0
          %1057 = vmatprep.subr.bf16.mxu0 0
          %1058 = vmatpush1.bf16.msra.mxu0 0
          %1059 = vmatprep.subr.bf16.mxu0 0
          %1060 = vmatpush1.bf16.msra.mxu0 0
          %1061 = vmatprep.subr.bf16.mxu0 0
          %1062 = vmatpush1.bf16.msra.mxu0 0
          %1063 = vmatprep.subr.bf16.mxu0 0
          %1064 = vmatpush1.bf16.msra.mxu0 0
          %1065 = vmatprep.subr.bf16.mxu0 0
          %1066 = vmatpush1.bf16.msra.mxu0 0
          %1067 = vmatprep.subr.bf16.mxu0 0
          %1068 = vmatpush1.bf16.msra.mxu0 0
          %1069 = vmatprep.subr.bf16.mxu0 0
          %1070 = vmatpush1.bf16.msra.mxu0 0
          %1071 = vmatprep.subr.bf16.mxu0 0
          %1072 = vmatpush1.bf16.msra.mxu0 0
          %1073 = vmatprep.subr.bf16.mxu0 0
          %1074 = vmatpush1.bf16.msra.mxu0 0
          %1075 = vmatprep.subr.bf16.mxu0 0
          %1076 = vmatpush1.bf16.msra.mxu0 0
          %1077 = vmatprep.subr.bf16.mxu0 0
          %1078 = vmatpush1.bf16.msra.mxu0 0
          %1079 = vmatprep.subr.bf16.mxu0 0
          %1080 = vmatpush1.bf16.msra.mxu0 0
          %1081 = vmatprep.subr.bf16.mxu0 0
          %1082 = vmatpush1.bf16.msra.mxu0 0
          %1083 = vmatprep.mubr.bf16.mxu0 0
          %1084 = vmatmul.mubr.bf16.gmra.mrb[0].mxu0 %v1046
          %v1085 = vpop.f32.mrb[0].mxu0
          %v1086 = vadd.f32 0.0, %v1085
          %v1087 = vpop.f32.mrb[0].mxu0
          %v1088 = vpop.f32.mrb[0].mxu0
          %v1089 = vpop.f32.mrb[0].mxu0
          %1090 = vdwg.mxu0
          %vm1091 = vcmask 261120
          %v1092 = vsel %vm1091, %v948, 0.0
          %v1093 = vsel %vm1091, %v994, 0.0
          %v1094 = vadd.f32 %v1092, %v1093
          %v1095 = vsel %vm1091, %v1040, 0.0
          %v1096 = vadd.f32 %v1094, %v1095
          %v1097 = vsel %vm1091, %v1086, 0.0
          %v1098 = vadd.f32 %v1096, %v1097
          %v1099 = vld [vmem:[%s4] sm:$0x1]
          %v1101 = vlaneseq
          %v1102 = vshrl.u32 %v1101, 7
          %v1103 = vsub.s32 0, %v1102
          %v1104 = vrot.slane %v1099, %v1103
          %v1106 = vadd.f32 %v1098, %v1104
          %1107 = vst.msk [vmem:[%s292] sm:$0xff] %vm1091, %v1106
        $region48: #{attention_forward.3} parent=39 // pred_fallthru
          _
        %s1108 = sand.u32 %s174, 1
        %s1109 = scalar_lea.sflag [#allocation6], %s1108
        %s1110 = sand.u32 %s174, 1
        %s1111 = smul.addr %s1110, 8
        %s1112 = scalar_lea.vmem [#allocation5], %s1111
        // Predicated region
        $region49: #{attention_forward.3} parent=39 // pred_check
          %p1113 = pneg %p184
        $region50: #{attention_forward.3} parent=39 // pred_check_branch
          %1115 = sbr.rel (%p1113) target = $region52
        $region51: #{attention_forward.3} parent=39 // pred_region
          %s1117 = ssub.s32 128, 128
          %1118 = vsyncadd %s1109, %s1117
          %s1119 = sadd.s32 %s25, %s24
          %s1120 = smul.addr %s1119, 128
          %s1121 = scalar_lea.hbm %s5, %s1120
          %s1123 = sshll.u32 %s1112, 4
          %s1124 = int_to_ptr.vmem [resolvable:$true] %s1123
          %1126 = dma.vmem_to_hbm [thread:$0]  %s1124, 128, %s1121, %s1109
        $region52: #{attention_forward.3} parent=39 // pred_fallthru
          _
      $region40: #{attention_forward.3} parent=5 // pred_fallthru
        _
      %p1127 = scmp.le.s32.totalorder 2, %s14
      // Predicated region
      $region53: #{attention_forward.3} parent=5 // pred_check
        %p1128 = pneg %p1127
      $region54: #{attention_forward.3} parent=5 // pred_check_branch
        %1130 = sbr.rel (%p1128) target = $region56
      $region55: #{attention_forward.3} parent=5 // pred_region
        %s1131 = ssub.s32 %s14, 2
        // Predicated region
        $region57: #{attention_forward.3} parent=55 // pred_check
          %p1132 = pneg %p190
        $region58: #{attention_forward.3} parent=55 // pred_check_branch
          %1134 = sbr.rel (%p1132) target = $region60
        $region59: #{attention_forward.3} parent=55 // pred_region
          %s1135 = sand.u32 %s175, 1
          %s1136 = scalar_lea.sflag [#allocation6], %s1135
          %s1137 = sand.u32 %s175, 1
          %s1138 = smul.addr %s1137, 8
          %s1139 = scalar_lea.vmem [#allocation5], %s1138
          %1140 = dma.done %s1136, 128
        $region60: #{attention_forward.3} parent=55 // pred_fallthru
          _
      $region56: #{attention_forward.3} parent=5 // pred_fallthru
        _
    $region6: #{attention_forward.3} parent=1 // loop_footer
      %s18 = sadd.s32 1, %s14
    $region7: #{attention_forward.3} parent=1 // loop_footer_branch
      %13 = sbr.rel target = $region3
    $region8: #{attention_forward.3} parent=1 // loop_exit
      _
    %1141 = vsyncpa [#allocation6], 1
    %s1142 = scalar_lea.sflag [#allocation6], 1
    %1143 = vsyncpa %s1142, 1

</llo_original>
